<compile_context>
chip_gen: v7x
topology: tpu7x:2x2x1
jax: 0.10.0
libtpu: 0.0.40
codegen_flags: <defaults>
</compile_context>

<pallas_src>
import numpy as np
import jax
import jax.numpy as jnp
from jax import lax
from jax.experimental import pallas as pl
from jax.experimental.pallas import tpu as pltpu


def _round_up(x, m):
    return ((x + m - 1) // m) * m


def _bf16_roundtrip(a):
    """Quantize to bf16 and back to f32 (so kernel and reference agree)."""
    return np.asarray(jnp.asarray(a, jnp.bfloat16).astype(jnp.float32))


def _make_lstm_seq_kernel(n_layers, n_units, n_steps, t_pad, out_pad):
    """Single-invocation sequence kernel (B == 1, batch dim folded away).

    Refs (in order):
      inputs : xs    (t_pad, in_dim)        f32   padded inputs (rows >= n_steps are 0)
               wih0  (in_dim, 4n)           f32   layer-0 input weights (g-cols x2)
               wihr  (L, n_units, 4n)       bf16  input weights, layers >= 1 (row 0 unused)
               whh   (L, n_units, 4n)       bf16  recurrent weights (g-cols x2)
               b     (L, 1, 4n)             f32   b_ih + b_hh per layer (g-cols x2)
               fcw   (n_units, out_pad)     f32
               fcb   (1, out_pad)           f32
               st_in (2L, 1, n_units)       f32   [h0,c0,h1,c1,...]
               pos_in(1, out_pad)           f32   initial pos (padded)
      outputs: ys      (t_pad, out_pad)     f32
               pos_tr  (t_pad, out_pad)     f32   cumulative pos trajectory
               st_out  (2L, 1, n_units)     f32
      scratch: xp_scr  (t_pad, 4n) VMEM, hs_scr (t_pad, n_units) VMEM
    """
    n = n_units

    def kernel(xs_ref, wih0_ref, wihr_ref, whh_ref, b_ref, fcw_ref, fcb_ref,
               st_in_ref, pos_in_ref,
               ys_ref, pos_tr_ref, st_out_ref,
               xp_scr, hs_scr):
        # ---- layer-0 input projection for the whole chunk (off the recurrent
        #      critical path); layer-0 bias folded in.
        xp_scr[...] = (jnp.dot(xs_ref[...], wih0_ref[...],
                               preferred_element_type=jnp.float32) + b_ref[0])

        # ---- hoist loop-invariant per-layer weight/bias loads out of the loop.
        whh = [whh_ref[l] for l in range(n_layers)]            # bf16 (n, 4n)
        wih = [wihr_ref[l] for l in range(1, n_layers)]        # bf16 (n, 4n)
        bias = [b_ref[l] for l in range(1, n_layers)]           # f32  (1, 4n)
        fcw = fcw_ref[...]
        fcb = fcb_ref[...]

        # ---- register-carried recurrent state (read VMEM once).
        h = [st_in_ref[2 * l] for l in range(n_layers)]         # (1, n) f32
        c = [st_in_ref[2 * l + 1] for l in range(n_layers)]

        # Padded rows must be 0 (uninitialized VMEM could be NaN and 0*NaN=NaN
        # would contaminate the triangular cumulative-sum matmul).
        hs_scr[...] = jnp.zeros_like(hs_scr)

        # ---- fully unrolled time loop: static indices, full LLO visibility.
        for t in range(n_steps):
            for l in range(n_layers):
                rec = jnp.dot(h[l].astype(jnp.bfloat16), whh[l],
                              preferred_element_type=jnp.float32)
                if l == 0:
                    gates = xp_scr[pl.ds(t, 1), :] + rec
                else:
                    gates = (jnp.dot(h[l - 1].astype(jnp.bfloat16), wih[l - 1],
                                     preferred_element_type=jnp.float32)
                             + rec + bias[l - 1])
                # Single EUP pass over the 4n-lane gates vreg; tanh of the
                # g-gate via the identity tanh(z) = 2*sigmoid(2z) - 1 (the
                # g-gate columns of W/b were pre-scaled by 2 at pack time).
                sg = jax.nn.sigmoid(gates)
                i_g = sg[:, 0 * n:1 * n]
                f_g = sg[:, 1 * n:2 * n]
                g_g = 2.0 * sg[:, 2 * n:3 * n] - 1.0
                o_g = sg[:, 3 * n:4 * n]
                c[l] = f_g * c[l] + i_g * g_g
                h[l] = o_g * jnp.tanh(c[l])
            # Stash last layer's h_t (small store, off the recurrent chain).
            hs_scr[pl.ds(t, 1), :] = h[n_layers - 1]

        # ---- fc1 for all steps in one matmul; lane-dense (8,128) stores.
        ys = (jnp.dot(hs_scr[...], fcw, preferred_element_type=jnp.float32) + fcb)
        ys_ref[...] = ys

        # ---- cumulative pos trajectory via lower-triangular matmul on MXU.
        row = lax.broadcasted_iota(jnp.int32, (t_pad, t_pad), 0)
        col = lax.broadcasted_iota(jnp.int32, (t_pad, t_pad), 1)
        tri = (col <= row).astype(jnp.float32)
        pos_tr_ref[...] = pos_in_ref[...] + jnp.dot(
            tri, ys, preferred_element_type=jnp.float32)

        # ---- write back the final recurrent state (once).
        for l in range(n_layers):
            st_out_ref[2 * l] = h[l]
            st_out_ref[2 * l + 1] = c[l]

    return kernel


class MymodelPallas:
    """JAX/Pallas port of Mymodel (stacked LSTM cells + fc1 + pos accumulator)."""

    def __init__(self, in_dim, out_dim, n_units, n_layers, key):
        self.in_dim = in_dim
        self.out_dim = out_dim
        self.n_units = n_units
        self.n_layers = n_layers
        self.out_pad = max(128, _round_up(out_dim, 128))  # lane-dense output width
        self.chunk = 32                                    # max steps per pallas_call

        n4 = 4 * n_units
        s = 1.0 / np.sqrt(n_units)
        keys = jax.random.split(key, 4 * n_layers + 2)
        kidx = 0

        gscale = np.ones((1, n4), np.float32)
        gscale[0, 2 * n_units:3 * n_units] = 2.0           # pre-scale g-gate cols

        # Unpacked (reference) params + packed kernel params.
        self.wih_t, self.whh_t, self.bias = [], [], []
        wih0_pack = None
        wihr_pack = np.zeros((n_layers, n_units, n4), np.float32)
        whh_pack = np.zeros((n_layers, n_units, n4), np.float32)
        b_pack = np.zeros((n_layers, 1, n4), np.float32)

        for l in range(n_layers):
            layer_in = in_dim if l == 0 else n_units
            wih = jax.random.uniform(keys[kidx], (n4, layer_in),
                                     jnp.float32, -s, s); kidx += 1
            whh = jax.random.uniform(keys[kidx], (n4, n_units),
                                     jnp.float32, -s, s); kidx += 1
            b_ih = jax.random.uniform(keys[kidx], (n4,), jnp.float32, -s, s); kidx += 1
            b_hh = jax.random.uniform(keys[kidx], (n4,), jnp.float32, -s, s); kidx += 1
            wih_t = np.asarray(wih).T                       # (layer_in, 4n)
            whh_t = np.asarray(whh).T                       # (n_units, 4n)
            b = np.asarray(b_ih + b_hh)                     # PyTorch-like b_ih + b_hh

            # Recurrent-path operands are bf16 in the kernel; quantize once so
            # the pure-JAX reference uses the exact same weight values.
            whh_q = _bf16_roundtrip(whh_t)
            if l == 0:
                wih_use = wih_t                             # layer-0 projection stays f32
                wih0_pack = wih_t * gscale                  # (in_dim, 4n), g-cols x2
            else:
                wih_use = _bf16_roundtrip(wih_t)
                wihr_pack[l] = wih_use * gscale             # exact x2 in bf16
            whh_pack[l] = whh_q * gscale
            b_pack[l, 0] = b * gscale[0]

            self.wih_t.append(jnp.asarray(wih_use))
            self.whh_t.append(jnp.asarray(whh_q))
            self.bias.append(jnp.asarray(b)[None, :])

        fc_w = jax.random.uniform(keys[kidx], (out_dim, n_units),
                                  jnp.float32, -s, s); kidx += 1
        fc_b = jax.random.uniform(keys[kidx], (out_dim,), jnp.float32, -s, s); kidx += 1
        self.fc_w_t = jnp.asarray(np.asarray(fc_w).T)       # (n_units, out_dim)
        self.fc_b = jnp.asarray(fc_b)[None, :]              # (1, out_dim)
        fc_w_pad = np.zeros((n_units, self.out_pad), np.float32)
        fc_w_pad[:, :out_dim] = np.asarray(self.fc_w_t)
        fc_b_pad = np.zeros((1, self.out_pad), np.float32)
        fc_b_pad[0, :out_dim] = np.asarray(fc_b)

        self.wih0_pack = jnp.asarray(wih0_pack, jnp.float32)
        self.wihr_pack = jnp.asarray(wihr_pack, jnp.bfloat16)
        self.whh_pack = jnp.asarray(whh_pack, jnp.bfloat16)
        self.b_pack = jnp.asarray(b_pack, jnp.float32)
        self.fc_w_pad = jnp.asarray(fc_w_pad)
        self.fc_b_pad = jnp.asarray(fc_b_pad)

        self.pos = None
        self.state = None
        self.activity = None
        self.batchsize = None
        self._step_cache = {}

    # ---- kernel builder / cache --------------------------------------------

    def _get_step(self, tc):
        fn = self._step_cache.get(tc)
        if fn is not None:
            return fn
        t_pad = _round_up(tc, 8)
        nl, nu, out_pad = self.n_layers, self.n_units, self.out_pad
        kernel = _make_lstm_seq_kernel(nl, nu, tc, t_pad, out_pad)

        def step(xs_c, wih0, wihr, whh, b_all, fcw, fcb, state, pos0):
            return pl.pallas_call(
                kernel,
                out_shape=(
                    jax.ShapeDtypeStruct((t_pad, out_pad), jnp.float32),      # ys
                    jax.ShapeDtypeStruct((t_pad, out_pad), jnp.float32),      # pos trajectory
                    jax.ShapeDtypeStruct((2 * nl, 1, nu), jnp.float32),       # new state
                ),
                scratch_shapes=[
                    pltpu.VMEM((t_pad, 4 * nu), jnp.float32),                 # x-projection
                    pltpu.VMEM((t_pad, nu), jnp.float32),                     # last-layer h_t
                ],
            )(xs_c, wih0, wihr, whh, b_all, fcw, fcb, state, pos0)

        fn = jax.jit(step)
        self._step_cache[tc] = fn
        return fn

    # ---- stateful API (mirrors the PyTorch module) ---------------------------

    def reset_state(self, batchsize=1):
        assert batchsize == 1, "Mymodel pos semantics require batch == 1"
        self.batchsize = batchsize
        self.state = jnp.zeros((2 * self.n_layers, batchsize, self.n_units),
                               jnp.float32)
        self.pos = None

    def get_internal_state(self):
        return [(self.state[2 * l], self.state[2 * l + 1])
                for l in range(self.n_layers)]

    def forward_sequence(self, xs):
        """xs: (T, 1, in_dim). Runs T recurrent steps on device (chunked pallas_calls
        for long T); returns the per-step pos trajectory (T, out_dim)."""
        xs = jnp.asarray(xs, jnp.float32)
        T, B, _ = xs.shape
        assert B == 1 and B == self.batchsize, "call reset_state(1) first; batch must be 1"

        if self.pos is None:
            # original: pos = x.detach().numpy().flatten()[0:2]
            pos_vec = xs[0, 0, 0:2]
        else:
            pos_vec = self.pos
        pos0 = jnp.zeros((1, self.out_pad), jnp.float32
                         ).at[0, :pos_vec.shape[0]].set(pos_vec)

        chunks = []
        start = 0
        while start < T:
            tc = min(self.chunk, T - start)
            t_pad = _round_up(tc, 8)
            xs_c = jnp.zeros((t_pad, self.in_dim), jnp.float32
                             ).at[:tc].set(xs[start:start + tc, 0, :])
            step = self._get_step(tc)
            ys, pos_tr, new_state = step(
                xs_c, self.wih0_pack, self.wihr_pack, self.whh_pack, self.b_pack,
                self.fc_w_pad, self.fc_b_pad, self.state, pos0)
            self.state = new_state
            self.activity = ys[tc - 1:tc, :self.out_dim]         # (1, out_dim)
            chunks.append(pos_tr[:tc, :self.out_dim])
            pos0 = pos_tr[tc - 1:tc, :]                          # carry pos on device
            start += tc

        pos_traj = chunks[0] if len(chunks) == 1 else jnp.concatenate(chunks, axis=0)
        self.pos = pos_traj[-1]
        return pos_traj

    def forward(self, x):
        """Single step (same kernel, T=1); returns pos as a device array
        (no host sync in the hot path)."""
        self.forward_sequence(jnp.asarray(x, jnp.float32)[None, ...])
        return self.pos


# ---- pure-JAX reference (original per-step math, unpacked weights) -----------

def _reference_rollout(model, xs):
    T, B, _ = xs.shape
    nl, nu = model.n_layers, model.n_units
    h = [jnp.zeros((B, nu), jnp.float32) for _ in range(nl)]
    c = [jnp.zeros((B, nu), jnp.float32) for _ in range(nl)]
    pos = None
    ys, poss = [], []
    for t in range(T):
        inp = xs[t]
        for l in range(nl):
            gates = inp @ model.wih_t[l] + h[l] @ model.whh_t[l] + model.bias[l]
            i_g = jax.nn.sigmoid(gates[:, 0 * nu:1 * nu])
            f_g = jax.nn.sigmoid(gates[:, 1 * nu:2 * nu])
            g_g = jnp.tanh(gates[:, 2 * nu:3 * nu])
            o_g = jax.nn.sigmoid(gates[:, 3 * nu:4 * nu])
            c[l] = f_g * c[l] + i_g * g_g
            h[l] = o_g * jnp.tanh(c[l])
            inp = h[l]
        y = inp @ model.fc_w_t + model.fc_b
        if pos is None:
            pos = xs[0].flatten()[0:2]
        pos = pos + y.flatten()
        ys.append(y)
        poss.append(pos)
    return jnp.stack(ys), jnp.stack(poss), h, c


if __name__ == "__main__":
    # Shapes implied by the module: batch=1 (pos has length 2), out_dim=2.
    in_dim, out_dim, n_units, n_layers = 8, 2, 32, 2
    batch, T = 1, 8

    key = jax.random.PRNGKey(0)
    k_param, k_x = jax.random.split(key)

    model = MymodelPallas(in_dim, out_dim, n_units, n_layers, k_param)
    model.reset_state(batchsize=batch)

    xs = jax.random.normal(k_x, (T + 1, batch, in_dim), jnp.float32)

    # Optimized path: first T recurrent steps inside a single pallas_call ...
    pos_traj = model.forward_sequence(xs[:T])
    # ... plus the per-step API (same kernel, T=1) for the final input.
    pos_last = model.forward(xs[T])
    jax.block_until_ready(pos_last)

    # Correctness check against a pure-JAX rollout with the same parameters
    # (recurrent weights bf16-roundtripped identically in kernel and reference).
    ref_ys, ref_pos, ref_h, ref_c = _reference_rollout(model, xs)
    got_pos = jnp.concatenate([pos_traj, pos_last[None, :]], axis=0)
    err_pos = float(jnp.max(jnp.abs(got_pos - ref_pos)))
    err_state = 0.0
    for l in range(n_layers):
        err_state = max(err_state,
                        float(jnp.max(jnp.abs(model.state[2 * l] - ref_h[l]))),
                        float(jnp.max(jnp.abs(model.state[2 * l + 1] - ref_c[l]))))
    if err_pos > 1e-2 or err_state > 1e-2:
        raise SystemExit(f"MISMATCH pos_err={err_pos} state_err={err_state}")
    print("KERNEL_OK")
</pallas_src>

<mosaic_0001>
module attributes {stable_mosaic.version = 11 : i64} {
  func.func @kernel(%arg0: memref<8x8xf32, #tpu.memory_space<vmem>>, %arg1: memref<8x128xf32, #tpu.memory_space<vmem>>, %arg2: memref<2x32x128xbf16, #tpu.memory_space<vmem>>, %arg3: memref<2x32x128xbf16, #tpu.memory_space<vmem>>, %arg4: memref<2x1x128xf32, #tpu.memory_space<vmem>>, %arg5: memref<32x128xf32, #tpu.memory_space<vmem>>, %arg6: memref<1x128xf32, #tpu.memory_space<vmem>>, %arg7: memref<4x1x32xf32, #tpu.memory_space<vmem>>, %arg8: memref<1x128xf32, #tpu.memory_space<vmem>>, %arg9: memref<8x128xf32, #tpu.memory_space<vmem>>, %arg10: memref<8x128xf32, #tpu.memory_space<vmem>>, %arg11: memref<4x1x32xf32, #tpu.memory_space<vmem>>, %arg12: memref<8x128xf32, #tpu.memory_space<vmem>>, %arg13: memref<8x32xf32, #tpu.memory_space<vmem>>) attributes {dimension_semantics = [], scalar_prefetch = 0 : i64, scratch_operands = 2 : i64, tpu.core_type = #tpu.core_type<tc>} {
    %c0 = arith.constant 0 : index
    %c0_0 = arith.constant 0 : index
    %0 = vector.load %arg0[%c0, %c0_0] : memref<8x8xf32, #tpu.memory_space<vmem>>, vector<8x8xf32>
    %c0_1 = arith.constant 0 : index
    %c0_2 = arith.constant 0 : index
    %1 = vector.load %arg1[%c0_1, %c0_2] : memref<8x128xf32, #tpu.memory_space<vmem>>, vector<8x128xf32>
    %cst = arith.constant dense<0.000000e+00> : vector<8x128xf32>
    %2 = tpu.matmul %0, %1, %cst {dimension_numbers = #tpu.dot_dimension_numbers<[1], [0], [0], [1], [0, 0, 1, 1], [], []>} : vector<8x8xf32>, vector<8x128xf32>, vector<8x128xf32> -> vector<8x128xf32>
    %c0_3 = arith.constant 0 : index
    %c0_4 = arith.constant 0 : index
    %c0_5 = arith.constant 0 : index
    %3 = vector.load %arg4[%c0_3, %c0_4, %c0_5] : memref<2x1x128xf32, #tpu.memory_space<vmem>>, vector<1x1x128xf32>
    %4 = vector.shape_cast %3 : vector<1x1x128xf32> to vector<1x128xf32>
    %5 = vector.broadcast %4 : vector<1x128xf32> to vector<8x128xf32>
    %6 = arith.addf %2, %5 : vector<8x128xf32>
    %c0_6 = arith.constant 0 : index
    %c0_7 = arith.constant 0 : index
    %7 = vector.load %arg12[%c0_6, %c0_7] : memref<8x128xf32, #tpu.memory_space<vmem>>, vector<8x128xf32>
    tpu.vector_store %arg12[%c0_6, %c0_7], %6 {strides = array<i32>} : memref<8x128xf32, #tpu.memory_space<vmem>>, vector<8x128xf32>,
    %c0_8 = arith.constant 0 : index
    %c0_9 = arith.constant 0 : index
    %c0_10 = arith.constant 0 : index
    %8 = vector.load %arg3[%c0_8, %c0_9, %c0_10] : memref<2x32x128xbf16, #tpu.memory_space<vmem>>, vector<1x32x128xbf16>
    %9 = vector.shape_cast %8 : vector<1x32x128xbf16> to vector<32x128xbf16>
    %c1 = arith.constant 1 : index
    %c0_11 = arith.constant 0 : index
    %c0_12 = arith.constant 0 : index
    %10 = vector.load %arg3[%c1, %c0_11, %c0_12] : memref<2x32x128xbf16, #tpu.memory_space<vmem>>, vector<1x32x128xbf16>
    %11 = vector.shape_cast %10 : vector<1x32x128xbf16> to vector<32x128xbf16>
    %c1_13 = arith.constant 1 : index
    %c0_14 = arith.constant 0 : index
    %c0_15 = arith.constant 0 : index
    %12 = vector.load %arg2[%c1_13, %c0_14, %c0_15] : memref<2x32x128xbf16, #tpu.memory_space<vmem>>, vector<1x32x128xbf16>
    %13 = vector.shape_cast %12 : vector<1x32x128xbf16> to vector<32x128xbf16>
    %c1_16 = arith.constant 1 : index
    %c0_17 = arith.constant 0 : index
    %c0_18 = arith.constant 0 : index
    %14 = vector.load %arg4[%c1_16, %c0_17, %c0_18] : memref<2x1x128xf32, #tpu.memory_space<vmem>>, vector<1x1x128xf32>
    %15 = vector.shape_cast %14 : vector<1x1x128xf32> to vector<1x128xf32>
    %c0_19 = arith.constant 0 : index
    %c0_20 = arith.constant 0 : index
    %16 = vector.load %arg5[%c0_19, %c0_20] : memref<32x128xf32, #tpu.memory_space<vmem>>, vector<32x128xf32>
    %c0_21 = arith.constant 0 : index
    %c0_22 = arith.constant 0 : index
    %17 = vector.load %arg6[%c0_21, %c0_22] : memref<1x128xf32, #tpu.memory_space<vmem>>, vector<1x128xf32>
    %c0_23 = arith.constant 0 : index
    %c0_24 = arith.constant 0 : index
    %c0_25 = arith.constant 0 : index
    %18 = vector.load %arg7[%c0_23, %c0_24, %c0_25] : memref<4x1x32xf32, #tpu.memory_space<vmem>>, vector<1x1x32xf32>
    %19 = vector.shape_cast %18 : vector<1x1x32xf32> to vector<1x32xf32>
    %c2 = arith.constant 2 : index
    %c0_26 = arith.constant 0 : index
    %c0_27 = arith.constant 0 : index
    %20 = vector.load %arg7[%c2, %c0_26, %c0_27] : memref<4x1x32xf32, #tpu.memory_space<vmem>>, vector<1x1x32xf32>
    %21 = vector.shape_cast %20 : vector<1x1x32xf32> to vector<1x32xf32>
    %c1_28 = arith.constant 1 : index
    %c0_29 = arith.constant 0 : index
    %c0_30 = arith.constant 0 : index
    %22 = vector.load %arg7[%c1_28, %c0_29, %c0_30] : memref<4x1x32xf32, #tpu.memory_space<vmem>>, vector<1x1x32xf32>
    %23 = vector.shape_cast %22 : vector<1x1x32xf32> to vector<1x32xf32>
    %c3 = arith.constant 3 : index
    %c0_31 = arith.constant 0 : index
    %c0_32 = arith.constant 0 : index
    %24 = vector.load %arg7[%c3, %c0_31, %c0_32] : memref<4x1x32xf32, #tpu.memory_space<vmem>>, vector<1x1x32xf32>
    %25 = vector.shape_cast %24 : vector<1x1x32xf32> to vector<1x32xf32>
    %cst_33 = arith.constant 0.000000e+00 : f32
    %26 = vector.broadcast %cst_33 : f32 to vector<8x32xf32>
    %c0_34 = arith.constant 0 : index
    %c0_35 = arith.constant 0 : index
    %27 = vector.load %arg13[%c0_34, %c0_35] : memref<8x32xf32, #tpu.memory_space<vmem>>, vector<8x32xf32>
    tpu.vector_store %arg13[%c0_34, %c0_35], %26 {strides = array<i32>} : memref<8x32xf32, #tpu.memory_space<vmem>>, vector<8x32xf32>,
    %28 = arith.truncf %19 : vector<1x32xf32> to vector<1x32xbf16>
    %cst_36 = arith.constant dense<0.000000e+00> : vector<1x128xf32>
    %29 = tpu.matmul %28, %9, %cst_36 {dimension_numbers = #tpu.dot_dimension_numbers<[1], [0], [0], [1], [0, 0, 1, 1], [], []>} : vector<1x32xbf16>, vector<32x128xbf16>, vector<1x128xf32> -> vector<1x128xf32>
    %c0_37 = arith.constant 0 : index
    %c0_38 = arith.constant 0 : index
    %30 = vector.load %arg12[%c0_37, %c0_38] : memref<8x128xf32, #tpu.memory_space<vmem>>, vector<1x128xf32>
    %31 = arith.addf %30, %29 : vector<1x128xf32>
    %32 = arith.negf %31 : vector<1x128xf32>
    %33 = math.exp %32 : vector<1x128xf32>
    %cst_39 = arith.constant 1.000000e+00 : f32
    %34 = vector.broadcast %cst_39 : f32 to vector<1x128xf32>
    %35 = arith.addf %34, %33 : vector<1x128xf32>
    %36 = arith.divf %34, %35 : vector<1x128xf32>
    %37 = vector.extract_strided_slice %36 {offsets = [0, 0], sizes = [1, 32], strides = [1, 1]} : vector<1x128xf32> to vector<1x32xf32>
    %38 = vector.extract_strided_slice %36 {offsets = [0, 32], sizes = [1, 32], strides = [1, 1]} : vector<1x128xf32> to vector<1x32xf32>
    %39 = vector.extract_strided_slice %36 {offsets = [0, 64], sizes = [1, 32], strides = [1, 1]} : vector<1x128xf32> to vector<1x32xf32>
    %cst_40 = arith.constant 2.000000e+00 : f32
    %40 = vector.broadcast %cst_40 : f32 to vector<1x32xf32>
    %41 = arith.mulf %40, %39 : vector<1x32xf32>
    %cst_41 = arith.constant 1.000000e+00 : f32
    %42 = vector.broadcast %cst_41 : f32 to vector<1x32xf32>
    %43 = arith.subf %41, %42 : vector<1x32xf32>
    %44 = vector.extract_strided_slice %36 {offsets = [0, 96], sizes = [1, 32], strides = [1, 1]} : vector<1x128xf32> to vector<1x32xf32>
    %45 = arith.mulf %38, %23 : vector<1x32xf32>
    %46 = arith.mulf %37, %43 : vector<1x32xf32>
    %47 = arith.addf %45, %46 : vector<1x32xf32>
    %48 = math.tanh %47 : vector<1x32xf32>
    %49 = arith.mulf %44, %48 : vector<1x32xf32>
    %50 = arith.truncf %21 : vector<1x32xf32> to vector<1x32xbf16>
    %cst_42 = arith.constant dense<0.000000e+00> : vector<1x128xf32>
    %51 = tpu.matmul %50, %11, %cst_42 {dimension_numbers = #tpu.dot_dimension_numbers<[1], [0], [0], [1], [0, 0, 1, 1], [], []>} : vector<1x32xbf16>, vector<32x128xbf16>, vector<1x128xf32> -> vector<1x128xf32>
    %52 = arith.truncf %49 : vector<1x32xf32> to vector<1x32xbf16>
    %cst_43 = arith.constant dense<0.000000e+00> : vector<1x128xf32>
    %53 = tpu.matmul %52, %13, %cst_43 {dimension_numbers = #tpu.dot_dimension_numbers<[1], [0], [0], [1], [0, 0, 1, 1], [], []>} : vector<1x32xbf16>, vector<32x128xbf16>, vector<1x128xf32> -> vector<1x128xf32>
    %54 = arith.addf %53, %51 : vector<1x128xf32>
    %55 = arith.addf %54, %15 : vector<1x128xf32>
    %56 = arith.negf %55 : vector<1x128xf32>
    %57 = math.exp %56 : vector<1x128xf32>
    %cst_44 = arith.constant 1.000000e+00 : f32
    %58 = vector.broadcast %cst_44 : f32 to vector<1x128xf32>
    %59 = arith.addf %58, %57 : vector<1x128xf32>
    %60 = arith.divf %58, %59 : vector<1x128xf32>
    %61 = vector.extract_strided_slice %60 {offsets = [0, 0], sizes = [1, 32], strides = [1, 1]} : vector<1x128xf32> to vector<1x32xf32>
    %62 = vector.extract_strided_slice %60 {offsets = [0, 32], sizes = [1, 32], strides = [1, 1]} : vector<1x128xf32> to vector<1x32xf32>
    %63 = vector.extract_strided_slice %60 {offsets = [0, 64], sizes = [1, 32], strides = [1, 1]} : vector<1x128xf32> to vector<1x32xf32>
    %cst_45 = arith.constant 2.000000e+00 : f32
    %64 = vector.broadcast %cst_45 : f32 to vector<1x32xf32>
    %65 = arith.mulf %64, %63 : vector<1x32xf32>
    %cst_46 = arith.constant 1.000000e+00 : f32
    %66 = vector.broadcast %cst_46 : f32 to vector<1x32xf32>
    %67 = arith.subf %65, %66 : vector<1x32xf32>
    %68 = vector.extract_strided_slice %60 {offsets = [0, 96], sizes = [1, 32], strides = [1, 1]} : vector<1x128xf32> to vector<1x32xf32>
    %69 = arith.mulf %62, %25 : vector<1x32xf32>
    %70 = arith.mulf %61, %67 : vector<1x32xf32>
    %71 = arith.addf %69, %70 : vector<1x32xf32>
    %72 = math.tanh %71 : vector<1x32xf32>
    %73 = arith.mulf %68, %72 : vector<1x32xf32>
    %c0_47 = arith.constant 0 : index
    %c0_48 = arith.constant 0 : index
    %74 = vector.load %arg13[%c0_47, %c0_48] : memref<8x32xf32, #tpu.memory_space<vmem>>, vector<1x32xf32>
    tpu.vector_store %arg13[%c0_47, %c0_48], %73 {strides = array<i32>} : memref<8x32xf32, #tpu.memory_space<vmem>>, vector<1x32xf32>,
    %75 = arith.truncf %49 : vector<1x32xf32> to vector<1x32xbf16>
    %cst_49 = arith.constant dense<0.000000e+00> : vector<1x128xf32>
    %76 = tpu.matmul %75, %9, %cst_49 {dimension_numbers = #tpu.dot_dimension_numbers<[1], [0], [0], [1], [0, 0, 1, 1], [], []>} : vector<1x32xbf16>, vector<32x128xbf16>, vector<1x128xf32> -> vector<1x128xf32>
    %c1_50 = arith.constant 1 : index
    %c0_51 = arith.constant 0 : index
    %77 = vector.load %arg12[%c1_50, %c0_51] : memref<8x128xf32, #tpu.memory_space<vmem>>, vector<1x128xf32>
    %78 = arith.addf %77, %76 : vector<1x128xf32>
    %79 = arith.negf %78 : vector<1x128xf32>
    %80 = math.exp %79 : vector<1x128xf32>
    %cst_52 = arith.constant 1.000000e+00 : f32
    %81 = vector.broadcast %cst_52 : f32 to vector<1x128xf32>
    %82 = arith.addf %81, %80 : vector<1x128xf32>
    %83 = arith.divf %81, %82 : vector<1x128xf32>
    %84 = vector.extract_strided_slice %83 {offsets = [0, 0], sizes = [1, 32], strides = [1, 1]} : vector<1x128xf32> to vector<1x32xf32>
    %85 = vector.extract_strided_slice %83 {offsets = [0, 32], sizes = [1, 32], strides = [1, 1]} : vector<1x128xf32> to vector<1x32xf32>
    %86 = vector.extract_strided_slice %83 {offsets = [0, 64], sizes = [1, 32], strides = [1, 1]} : vector<1x128xf32> to vector<1x32xf32>
    %cst_53 = arith.constant 2.000000e+00 : f32
    %87 = vector.broadcast %cst_53 : f32 to vector<1x32xf32>
    %88 = arith.mulf %87, %86 : vector<1x32xf32>
    %cst_54 = arith.constant 1.000000e+00 : f32
    %89 = vector.broadcast %cst_54 : f32 to vector<1x32xf32>
    %90 = arith.subf %88, %89 : vector<1x32xf32>
    %91 = vector.extract_strided_slice %83 {offsets = [0, 96], sizes = [1, 32], strides = [1, 1]} : vector<1x128xf32> to vector<1x32xf32>
    %92 = arith.mulf %85, %47 : vector<1x32xf32>
    %93 = arith.mulf %84, %90 : vector<1x32xf32>
    %94 = arith.addf %92, %93 : vector<1x32xf32>
    %95 = math.tanh %94 : vector<1x32xf32>
    %96 = arith.mulf %91, %95 : vector<1x32xf32>
    %97 = arith.truncf %73 : vector<1x32xf32> to vector<1x32xbf16>
    %cst_55 = arith.constant dense<0.000000e+00> : vector<1x128xf32>
    %98 = tpu.matmul %97, %11, %cst_55 {dimension_numbers = #tpu.dot_dimension_numbers<[1], [0], [0], [1], [0, 0, 1, 1], [], []>} : vector<1x32xbf16>, vector<32x128xbf16>, vector<1x128xf32> -> vector<1x128xf32>
    %99 = arith.truncf %96 : vector<1x32xf32> to vector<1x32xbf16>
    %cst_56 = arith.constant dense<0.000000e+00> : vector<1x128xf32>
    %100 = tpu.matmul %99, %13, %cst_56 {dimension_numbers = #tpu.dot_dimension_numbers<[1], [0], [0], [1], [0, 0, 1, 1], [], []>} : vector<1x32xbf16>, vector<32x128xbf16>, vector<1x128xf32> -> vector<1x128xf32>
    %101 = arith.addf %100, %98 : vector<1x128xf32>
    %102 = arith.addf %101, %15 : vector<1x128xf32>
    %103 = arith.negf %102 : vector<1x128xf32>
    %104 = math.exp %103 : vector<1x128xf32>
    %cst_57 = arith.constant 1.000000e+00 : f32
    %105 = vector.broadcast %cst_57 : f32 to vector<1x128xf32>
    %106 = arith.addf %105, %104 : vector<1x128xf32>
    %107 = arith.divf %105, %106 : vector<1x128xf32>
    %108 = vector.extract_strided_slice %107 {offsets = [0, 0], sizes = [1, 32], strides = [1, 1]} : vector<1x128xf32> to vector<1x32xf32>
    %109 = vector.extract_strided_slice %107 {offsets = [0, 32], sizes = [1, 32], strides = [1, 1]} : vector<1x128xf32> to vector<1x32xf32>
    %110 = vector.extract_strided_slice %107 {offsets = [0, 64], sizes = [1, 32], strides = [1, 1]} : vector<1x128xf32> to vector<1x32xf32>
    %cst_58 = arith.constant 2.000000e+00 : f32
    %111 = vector.broadcast %cst_58 : f32 to vector<1x32xf32>
    %112 = arith.mulf %111, %110 : vector<1x32xf32>
    %cst_59 = arith.constant 1.000000e+00 : f32
    %113 = vector.broadcast %cst_59 : f32 to vector<1x32xf32>
    %114 = arith.subf %112, %113 : vector<1x32xf32>
    %115 = vector.extract_strided_slice %107 {offsets = [0, 96], sizes = [1, 32], strides = [1, 1]} : vector<1x128xf32> to vector<1x32xf32>
    %116 = arith.mulf %109, %71 : vector<1x32xf32>
    %117 = arith.mulf %108, %114 : vector<1x32xf32>
    %118 = arith.addf %116, %117 : vector<1x32xf32>
    %119 = math.tanh %118 : vector<1x32xf32>
    %120 = arith.mulf %115, %119 : vector<1x32xf32>
    %c1_60 = arith.constant 1 : index
    %c0_61 = arith.constant 0 : index
    %121 = vector.load %arg13[%c1_60, %c0_61] : memref<8x32xf32, #tpu.memory_space<vmem>>, vector<1x32xf32>
    tpu.vector_store %arg13[%c1_60, %c0_61], %120 {strides = array<i32>} : memref<8x32xf32, #tpu.memory_space<vmem>>, vector<1x32xf32>,
    %122 = arith.truncf %96 : vector<1x32xf32> to vector<1x32xbf16>
    %cst_62 = arith.constant dense<0.000000e+00> : vector<1x128xf32>
    %123 = tpu.matmul %122, %9, %cst_62 {dimension_numbers = #tpu.dot_dimension_numbers<[1], [0], [0], [1], [0, 0, 1, 1], [], []>} : vector<1x32xbf16>, vector<32x128xbf16>, vector<1x128xf32> -> vector<1x128xf32>
    %c2_63 = arith.constant 2 : index
    %c0_64 = arith.constant 0 : index
    %124 = vector.load %arg12[%c2_63, %c0_64] : memref<8x128xf32, #tpu.memory_space<vmem>>, vector<1x128xf32>
    %125 = arith.addf %124, %123 : vector<1x128xf32>
    %126 = arith.negf %125 : vector<1x128xf32>
    %127 = math.exp %126 : vector<1x128xf32>
    %cst_65 = arith.constant 1.000000e+00 : f32
    %128 = vector.broadcast %cst_65 : f32 to vector<1x128xf32>
    %129 = arith.addf %128, %127 : vector<1x128xf32>
    %130 = arith.divf %128, %129 : vector<1x128xf32>
    %131 = vector.extract_strided_slice %130 {offsets = [0, 0], sizes = [1, 32], strides = [1, 1]} : vector<1x128xf32> to vector<1x32xf32>
    %132 = vector.extract_strided_slice %130 {offsets = [0, 32], sizes = [1, 32], strides = [1, 1]} : vector<1x128xf32> to vector<1x32xf32>
    %133 = vector.extract_strided_slice %130 {offsets = [0, 64], sizes = [1, 32], strides = [1, 1]} : vector<1x128xf32> to vector<1x32xf32>
    %cst_66 = arith.constant 2.000000e+00 : f32
    %134 = vector.broadcast %cst_66 : f32 to vector<1x32xf32>
    %135 = arith.mulf %134, %133 : vector<1x32xf32>
    %cst_67 = arith.constant 1.000000e+00 : f32
    %136 = vector.broadcast %cst_67 : f32 to vector<1x32xf32>
    %137 = arith.subf %135, %136 : vector<1x32xf32>
    %138 = vector.extract_strided_slice %130 {offsets = [0, 96], sizes = [1, 32], strides = [1, 1]} : vector<1x128xf32> to vector<1x32xf32>
    %139 = arith.mulf %132, %94 : vector<1x32xf32>
    %140 = arith.mulf %131, %137 : vector<1x32xf32>
    %141 = arith.addf %139, %140 : vector<1x32xf32>
    %142 = math.tanh %141 : vector<1x32xf32>
    %143 = arith.mulf %138, %142 : vector<1x32xf32>
    %144 = arith.truncf %120 : vector<1x32xf32> to vector<1x32xbf16>
    %cst_68 = arith.constant dense<0.000000e+00> : vector<1x128xf32>
    %145 = tpu.matmul %144, %11, %cst_68 {dimension_numbers = #tpu.dot_dimension_numbers<[1], [0], [0], [1], [0, 0, 1, 1], [], []>} : vector<1x32xbf16>, vector<32x128xbf16>, vector<1x128xf32> -> vector<1x128xf32>
    %146 = arith.truncf %143 : vector<1x32xf32> to vector<1x32xbf16>
    %cst_69 = arith.constant dense<0.000000e+00> : vector<1x128xf32>
    %147 = tpu.matmul %146, %13, %cst_69 {dimension_numbers = #tpu.dot_dimension_numbers<[1], [0], [0], [1], [0, 0, 1, 1], [], []>} : vector<1x32xbf16>, vector<32x128xbf16>, vector<1x128xf32> -> vector<1x128xf32>
    %148 = arith.addf %147, %145 : vector<1x128xf32>
    %149 = arith.addf %148, %15 : vector<1x128xf32>
    %150 = arith.negf %149 : vector<1x128xf32>
    %151 = math.exp %150 : vector<1x128xf32>
    %cst_70 = arith.constant 1.000000e+00 : f32
    %152 = vector.broadcast %cst_70 : f32 to vector<1x128xf32>
    %153 = arith.addf %152, %151 : vector<1x128xf32>
    %154 = arith.divf %152, %153 : vector<1x128xf32>
    %155 = vector.extract_strided_slice %154 {offsets = [0, 0], sizes = [1, 32], strides = [1, 1]} : vector<1x128xf32> to vector<1x32xf32>
    %156 = vector.extract_strided_slice %154 {offsets = [0, 32], sizes = [1, 32], strides = [1, 1]} : vector<1x128xf32> to vector<1x32xf32>
    %157 = vector.extract_strided_slice %154 {offsets = [0, 64], sizes = [1, 32], strides = [1, 1]} : vector<1x128xf32> to vector<1x32xf32>
    %cst_71 = arith.constant 2.000000e+00 : f32
    %158 = vector.broadcast %cst_71 : f32 to vector<1x32xf32>
    %159 = arith.mulf %158, %157 : vector<1x32xf32>
    %cst_72 = arith.constant 1.000000e+00 : f32
    %160 = vector.broadcast %cst_72 : f32 to vector<1x32xf32>
    %161 = arith.subf %159, %160 : vector<1x32xf32>
    %162 = vector.extract_strided_slice %154 {offsets = [0, 96], sizes = [1, 32], strides = [1, 1]} : vector<1x128xf32> to vector<1x32xf32>
    %163 = arith.mulf %156, %118 : vector<1x32xf32>
    %164 = arith.mulf %155, %161 : vector<1x32xf32>
    %165 = arith.addf %163, %164 : vector<1x32xf32>
    %166 = math.tanh %165 : vector<1x32xf32>
    %167 = arith.mulf %162, %166 : vector<1x32xf32>
    %c2_73 = arith.constant 2 : index
    %c0_74 = arith.constant 0 : index
    %168 = vector.load %arg13[%c2_73, %c0_74] : memref<8x32xf32, #tpu.memory_space<vmem>>, vector<1x32xf32>
    tpu.vector_store %arg13[%c2_73, %c0_74], %167 {strides = array<i32>} : memref<8x32xf32, #tpu.memory_space<vmem>>, vector<1x32xf32>,
    %169 = arith.truncf %143 : vector<1x32xf32> to vector<1x32xbf16>
    %cst_75 = arith.constant dense<0.000000e+00> : vector<1x128xf32>
    %170 = tpu.matmul %169, %9, %cst_75 {dimension_numbers = #tpu.dot_dimension_numbers<[1], [0], [0], [1], [0, 0, 1, 1], [], []>} : vector<1x32xbf16>, vector<32x128xbf16>, vector<1x128xf32> -> vector<1x128xf32>
    %c3_76 = arith.constant 3 : index
    %c0_77 = arith.constant 0 : index
    %171 = vector.load %arg12[%c3_76, %c0_77] : memref<8x128xf32, #tpu.memory_space<vmem>>, vector<1x128xf32>
    %172 = arith.addf %171, %170 : vector<1x128xf32>
    %173 = arith.negf %172 : vector<1x128xf32>
    %174 = math.exp %173 : vector<1x128xf32>
    %cst_78 = arith.constant 1.000000e+00 : f32
    %175 = vector.broadcast %cst_78 : f32 to vector<1x128xf32>
    %176 = arith.addf %175, %174 : vector<1x128xf32>
    %177 = arith.divf %175, %176 : vector<1x128xf32>
    %178 = vector.extract_strided_slice %177 {offsets = [0, 0], sizes = [1, 32], strides = [1, 1]} : vector<1x128xf32> to vector<1x32xf32>
    %179 = vector.extract_strided_slice %177 {offsets = [0, 32], sizes = [1, 32], strides = [1, 1]} : vector<1x128xf32> to vector<1x32xf32>
    %180 = vector.extract_strided_slice %177 {offsets = [0, 64], sizes = [1, 32], strides = [1, 1]} : vector<1x128xf32> to vector<1x32xf32>
    %cst_79 = arith.constant 2.000000e+00 : f32
    %181 = vector.broadcast %cst_79 : f32 to vector<1x32xf32>
    %182 = arith.mulf %181, %180 : vector<1x32xf32>
    %cst_80 = arith.constant 1.000000e+00 : f32
    %183 = vector.broadcast %cst_80 : f32 to vector<1x32xf32>
    %184 = arith.subf %182, %183 : vector<1x32xf32>
    %185 = vector.extract_strided_slice %177 {offsets = [0, 96], sizes = [1, 32], strides = [1, 1]} : vector<1x128xf32> to vector<1x32xf32>
    %186 = arith.mulf %179, %141 : vector<1x32xf32>
    %187 = arith.mulf %178, %184 : vector<1x32xf32>
    %188 = arith.addf %186, %187 : vector<1x32xf32>
    %189 = math.tanh %188 : vector<1x32xf32>
    %190 = arith.mulf %185, %189 : vector<1x32xf32>
    %191 = arith.truncf %167 : vector<1x32xf32> to vector<1x32xbf16>
    %cst_81 = arith.constant dense<0.000000e+00> : vector<1x128xf32>
    %192 = tpu.matmul %191, %11, %cst_81 {dimension_numbers = #tpu.dot_dimension_numbers<[1], [0], [0], [1], [0, 0, 1, 1], [], []>} : vector<1x32xbf16>, vector<32x128xbf16>, vector<1x128xf32> -> vector<1x128xf32>
    %193 = arith.truncf %190 : vector<1x32xf32> to vector<1x32xbf16>
    %cst_82 = arith.constant dense<0.000000e+00> : vector<1x128xf32>
    %194 = tpu.matmul %193, %13, %cst_82 {dimension_numbers = #tpu.dot_dimension_numbers<[1], [0], [0], [1], [0, 0, 1, 1], [], []>} : vector<1x32xbf16>, vector<32x128xbf16>, vector<1x128xf32> -> vector<1x128xf32>
    %195 = arith.addf %194, %192 : vector<1x128xf32>
    %196 = arith.addf %195, %15 : vector<1x128xf32>
    %197 = arith.negf %196 : vector<1x128xf32>
    %198 = math.exp %197 : vector<1x128xf32>
    %cst_83 = arith.constant 1.000000e+00 : f32
    %199 = vector.broadcast %cst_83 : f32 to vector<1x128xf32>
    %200 = arith.addf %199, %198 : vector<1x128xf32>
    %201 = arith.divf %199, %200 : vector<1x128xf32>
    %202 = vector.extract_strided_slice %201 {offsets = [0, 0], sizes = [1, 32], strides = [1, 1]} : vector<1x128xf32> to vector<1x32xf32>
    %203 = vector.extract_strided_slice %201 {offsets = [0, 32], sizes = [1, 32], strides = [1, 1]} : vector<1x128xf32> to vector<1x32xf32>
    %204 = vector.extract_strided_slice %201 {offsets = [0, 64], sizes = [1, 32], strides = [1, 1]} : vector<1x128xf32> to vector<1x32xf32>
    %cst_84 = arith.constant 2.000000e+00 : f32
    %205 = vector.broadcast %cst_84 : f32 to vector<1x32xf32>
    %206 = arith.mulf %205, %204 : vector<1x32xf32>
    %cst_85 = arith.constant 1.000000e+00 : f32
    %207 = vector.broadcast %cst_85 : f32 to vector<1x32xf32>
    %208 = arith.subf %206, %207 : vector<1x32xf32>
    %209 = vector.extract_strided_slice %201 {offsets = [0, 96], sizes = [1, 32], strides = [1, 1]} : vector<1x128xf32> to vector<1x32xf32>
    %210 = arith.mulf %203, %165 : vector<1x32xf32>
    %211 = arith.mulf %202, %208 : vector<1x32xf32>
    %212 = arith.addf %210, %211 : vector<1x32xf32>
    %213 = math.tanh %212 : vector<1x32xf32>
    %214 = arith.mulf %209, %213 : vector<1x32xf32>
    %c3_86 = arith.constant 3 : index
    %c0_87 = arith.constant 0 : index
    %215 = vector.load %arg13[%c3_86, %c0_87] : memref<8x32xf32, #tpu.memory_space<vmem>>, vector<1x32xf32>
    tpu.vector_store %arg13[%c3_86, %c0_87], %214 {strides = array<i32>} : memref<8x32xf32, #tpu.memory_space<vmem>>, vector<1x32xf32>,
    %216 = arith.truncf %190 : vector<1x32xf32> to vector<1x32xbf16>
    %cst_88 = arith.constant dense<0.000000e+00> : vector<1x128xf32>
    %217 = tpu.matmul %216, %9, %cst_88 {dimension_numbers = #tpu.dot_dimension_numbers<[1], [0], [0], [1], [0, 0, 1, 1], [], []>} : vector<1x32xbf16>, vector<32x128xbf16>, vector<1x128xf32> -> vector<1x128xf32>
    %c4 = arith.constant 4 : index
    %c0_89 = arith.constant 0 : index
    %218 = vector.load %arg12[%c4, %c0_89] : memref<8x128xf32, #tpu.memory_space<vmem>>, vector<1x128xf32>
    %219 = arith.addf %218, %217 : vector<1x128xf32>
    %220 = arith.negf %219 : vector<1x128xf32>
    %221 = math.exp %220 : vector<1x128xf32>
    %cst_90 = arith.constant 1.000000e+00 : f32
    %222 = vector.broadcast %cst_90 : f32 to vector<1x128xf32>
    %223 = arith.addf %222, %221 : vector<1x128xf32>
    %224 = arith.divf %222, %223 : vector<1x128xf32>
    %225 = vector.extract_strided_slice %224 {offsets = [0, 0], sizes = [1, 32], strides = [1, 1]} : vector<1x128xf32> to vector<1x32xf32>
    %226 = vector.extract_strided_slice %224 {offsets = [0, 32], sizes = [1, 32], strides = [1, 1]} : vector<1x128xf32> to vector<1x32xf32>
    %227 = vector.extract_strided_slice %224 {offsets = [0, 64], sizes = [1, 32], strides = [1, 1]} : vector<1x128xf32> to vector<1x32xf32>
    %cst_91 = arith.constant 2.000000e+00 : f32
    %228 = vector.broadcast %cst_91 : f32 to vector<1x32xf32>
    %229 = arith.mulf %228, %227 : vector<1x32xf32>
    %cst_92 = arith.constant 1.000000e+00 : f32
    %230 = vector.broadcast %cst_92 : f32 to vector<1x32xf32>
    %231 = arith.subf %229, %230 : vector<1x32xf32>
    %232 = vector.extract_strided_slice %224 {offsets = [0, 96], sizes = [1, 32], strides = [1, 1]} : vector<1x128xf32> to vector<1x32xf32>
    %233 = arith.mulf %226, %188 : vector<1x32xf32>
    %234 = arith.mulf %225, %231 : vector<1x32xf32>
    %235 = arith.addf %233, %234 : vector<1x32xf32>
    %236 = math.tanh %235 : vector<1x32xf32>
    %237 = arith.mulf %232, %236 : vector<1x32xf32>
    %238 = arith.truncf %214 : vector<1x32xf32> to vector<1x32xbf16>
    %cst_93 = arith.constant dense<0.000000e+00> : vector<1x128xf32>
    %239 = tpu.matmul %238, %11, %cst_93 {dimension_numbers = #tpu.dot_dimension_numbers<[1], [0], [0], [1], [0, 0, 1, 1], [], []>} : vector<1x32xbf16>, vector<32x128xbf16>, vector<1x128xf32> -> vector<1x128xf32>
    %240 = arith.truncf %237 : vector<1x32xf32> to vector<1x32xbf16>
    %cst_94 = arith.constant dense<0.000000e+00> : vector<1x128xf32>
    %241 = tpu.matmul %240, %13, %cst_94 {dimension_numbers = #tpu.dot_dimension_numbers<[1], [0], [0], [1], [0, 0, 1, 1], [], []>} : vector<1x32xbf16>, vector<32x128xbf16>, vector<1x128xf32> -> vector<1x128xf32>
    %242 = arith.addf %241, %239 : vector<1x128xf32>
    %243 = arith.addf %242, %15 : vector<1x128xf32>
    %244 = arith.negf %243 : vector<1x128xf32>
    %245 = math.exp %244 : vector<1x128xf32>
    %cst_95 = arith.constant 1.000000e+00 : f32
    %246 = vector.broadcast %cst_95 : f32 to vector<1x128xf32>
    %247 = arith.addf %246, %245 : vector<1x128xf32>
    %248 = arith.divf %246, %247 : vector<1x128xf32>
    %249 = vector.extract_strided_slice %248 {offsets = [0, 0], sizes = [1, 32], strides = [1, 1]} : vector<1x128xf32> to vector<1x32xf32>
    %250 = vector.extract_strided_slice %248 {offsets = [0, 32], sizes = [1, 32], strides = [1, 1]} : vector<1x128xf32> to vector<1x32xf32>
    %251 = vector.extract_strided_slice %248 {offsets = [0, 64], sizes = [1, 32], strides = [1, 1]} : vector<1x128xf32> to vector<1x32xf32>
    %cst_96 = arith.constant 2.000000e+00 : f32
    %252 = vector.broadcast %cst_96 : f32 to vector<1x32xf32>
    %253 = arith.mulf %252, %251 : vector<1x32xf32>
    %cst_97 = arith.constant 1.000000e+00 : f32
    %254 = vector.broadcast %cst_97 : f32 to vector<1x32xf32>
    %255 = arith.subf %253, %254 : vector<1x32xf32>
    %256 = vector.extract_strided_slice %248 {offsets = [0, 96], sizes = [1, 32], strides = [1, 1]} : vector<1x128xf32> to vector<1x32xf32>
    %257 = arith.mulf %250, %212 : vector<1x32xf32>
    %258 = arith.mulf %249, %255 : vector<1x32xf32>
    %259 = arith.addf %257, %258 : vector<1x32xf32>
    %260 = math.tanh %259 : vector<1x32xf32>
    %261 = arith.mulf %256, %260 : vector<1x32xf32>
    %c4_98 = arith.constant 4 : index
    %c0_99 = arith.constant 0 : index
    %262 = vector.load %arg13[%c4_98, %c0_99] : memref<8x32xf32, #tpu.memory_space<vmem>>, vector<1x32xf32>
    tpu.vector_store %arg13[%c4_98, %c0_99], %261 {strides = array<i32>} : memref<8x32xf32, #tpu.memory_space<vmem>>, vector<1x32xf32>,
    %263 = arith.truncf %237 : vector<1x32xf32> to vector<1x32xbf16>
    %cst_100 = arith.constant dense<0.000000e+00> : vector<1x128xf32>
    %264 = tpu.matmul %263, %9, %cst_100 {dimension_numbers = #tpu.dot_dimension_numbers<[1], [0], [0], [1], [0, 0, 1, 1], [], []>} : vector<1x32xbf16>, vector<32x128xbf16>, vector<1x128xf32> -> vector<1x128xf32>
    %c5 = arith.constant 5 : index
    %c0_101 = arith.constant 0 : index
    %265 = vector.load %arg12[%c5, %c0_101] : memref<8x128xf32, #tpu.memory_space<vmem>>, vector<1x128xf32>
    %266 = arith.addf %265, %264 : vector<1x128xf32>
    %267 = arith.negf %266 : vector<1x128xf32>
    %268 = math.exp %267 : vector<1x128xf32>
    %cst_102 = arith.constant 1.000000e+00 : f32
    %269 = vector.broadcast %cst_102 : f32 to vector<1x128xf32>
    %270 = arith.addf %269, %268 : vector<1x128xf32>
    %271 = arith.divf %269, %270 : vector<1x128xf32>
    %272 = vector.extract_strided_slice %271 {offsets = [0, 0], sizes = [1, 32], strides = [1, 1]} : vector<1x128xf32> to vector<1x32xf32>
    %273 = vector.extract_strided_slice %271 {offsets = [0, 32], sizes = [1, 32], strides = [1, 1]} : vector<1x128xf32> to vector<1x32xf32>
    %274 = vector.extract_strided_slice %271 {offsets = [0, 64], sizes = [1, 32], strides = [1, 1]} : vector<1x128xf32> to vector<1x32xf32>
    %cst_103 = arith.constant 2.000000e+00 : f32
    %275 = vector.broadcast %cst_103 : f32 to vector<1x32xf32>
    %276 = arith.mulf %275, %274 : vector<1x32xf32>
    %cst_104 = arith.constant 1.000000e+00 : f32
    %277 = vector.broadcast %cst_104 : f32 to vector<1x32xf32>
    %278 = arith.subf %276, %277 : vector<1x32xf32>
    %279 = vector.extract_strided_slice %271 {offsets = [0, 96], sizes = [1, 32], strides = [1, 1]} : vector<1x128xf32> to vector<1x32xf32>
    %280 = arith.mulf %273, %235 : vector<1x32xf32>
    %281 = arith.mulf %272, %278 : vector<1x32xf32>
    %282 = arith.addf %280, %281 : vector<1x32xf32>
    %283 = math.tanh %282 : vector<1x32xf32>
    %284 = arith.mulf %279, %283 : vector<1x32xf32>
    %285 = arith.truncf %261 : vector<1x32xf32> to vector<1x32xbf16>
    %cst_105 = arith.constant dense<0.000000e+00> : vector<1x128xf32>
    %286 = tpu.matmul %285, %11, %cst_105 {dimension_numbers = #tpu.dot_dimension_numbers<[1], [0], [0], [1], [0, 0, 1, 1], [], []>} : vector<1x32xbf16>, vector<32x128xbf16>, vector<1x128xf32> -> vector<1x128xf32>
    %287 = arith.truncf %284 : vector<1x32xf32> to vector<1x32xbf16>
    %cst_106 = arith.constant dense<0.000000e+00> : vector<1x128xf32>
    %288 = tpu.matmul %287, %13, %cst_106 {dimension_numbers = #tpu.dot_dimension_numbers<[1], [0], [0], [1], [0, 0, 1, 1], [], []>} : vector<1x32xbf16>, vector<32x128xbf16>, vector<1x128xf32> -> vector<1x128xf32>
    %289 = arith.addf %288, %286 : vector<1x128xf32>
    %290 = arith.addf %289, %15 : vector<1x128xf32>
    %291 = arith.negf %290 : vector<1x128xf32>
    %292 = math.exp %291 : vector<1x128xf32>
    %cst_107 = arith.constant 1.000000e+00 : f32
    %293 = vector.broadcast %cst_107 : f32 to vector<1x128xf32>
    %294 = arith.addf %293, %292 : vector<1x128xf32>
    %295 = arith.divf %293, %294 : vector<1x128xf32>
    %296 = vector.extract_strided_slice %295 {offsets = [0, 0], sizes = [1, 32], strides = [1, 1]} : vector<1x128xf32> to vector<1x32xf32>
    %297 = vector.extract_strided_slice %295 {offsets = [0, 32], sizes = [1, 32], strides = [1, 1]} : vector<1x128xf32> to vector<1x32xf32>
    %298 = vector.extract_strided_slice %295 {offsets = [0, 64], sizes = [1, 32], strides = [1, 1]} : vector<1x128xf32> to vector<1x32xf32>
    %cst_108 = arith.constant 2.000000e+00 : f32
    %299 = vector.broadcast %cst_108 : f32 to vector<1x32xf32>
    %300 = arith.mulf %299, %298 : vector<1x32xf32>
    %cst_109 = arith.constant 1.000000e+00 : f32
    %301 = vector.broadcast %cst_109 : f32 to vector<1x32xf32>
    %302 = arith.subf %300, %301 : vector<1x32xf32>
    %303 = vector.extract_strided_slice %295 {offsets = [0, 96], sizes = [1, 32], strides = [1, 1]} : vector<1x128xf32> to vector<1x32xf32>
    %304 = arith.mulf %297, %259 : vector<1x32xf32>
    %305 = arith.mulf %296, %302 : vector<1x32xf32>
    %306 = arith.addf %304, %305 : vector<1x32xf32>
    %307 = math.tanh %306 : vector<1x32xf32>
    %308 = arith.mulf %303, %307 : vector<1x32xf32>
    %c5_110 = arith.constant 5 : index
    %c0_111 = arith.constant 0 : index
    %309 = vector.load %arg13[%c5_110, %c0_111] : memref<8x32xf32, #tpu.memory_space<vmem>>, vector<1x32xf32>
    tpu.vector_store %arg13[%c5_110, %c0_111], %308 {strides = array<i32>} : memref<8x32xf32, #tpu.memory_space<vmem>>, vector<1x32xf32>,
    %310 = arith.truncf %284 : vector<1x32xf32> to vector<1x32xbf16>
    %cst_112 = arith.constant dense<0.000000e+00> : vector<1x128xf32>
    %311 = tpu.matmul %310, %9, %cst_112 {dimension_numbers = #tpu.dot_dimension_numbers<[1], [0], [0], [1], [0, 0, 1, 1], [], []>} : vector<1x32xbf16>, vector<32x128xbf16>, vector<1x128xf32> -> vector<1x128xf32>
    %c6 = arith.constant 6 : index
    %c0_113 = arith.constant 0 : index
    %312 = vector.load %arg12[%c6, %c0_113] : memref<8x128xf32, #tpu.memory_space<vmem>>, vector<1x128xf32>
    %313 = arith.addf %312, %311 : vector<1x128xf32>
    %314 = arith.negf %313 : vector<1x128xf32>
    %315 = math.exp %314 : vector<1x128xf32>
    %cst_114 = arith.constant 1.000000e+00 : f32
    %316 = vector.broadcast %cst_114 : f32 to vector<1x128xf32>
    %317 = arith.addf %316, %315 : vector<1x128xf32>
    %318 = arith.divf %316, %317 : vector<1x128xf32>
    %319 = vector.extract_strided_slice %318 {offsets = [0, 0], sizes = [1, 32], strides = [1, 1]} : vector<1x128xf32> to vector<1x32xf32>
    %320 = vector.extract_strided_slice %318 {offsets = [0, 32], sizes = [1, 32], strides = [1, 1]} : vector<1x128xf32> to vector<1x32xf32>
    %321 = vector.extract_strided_slice %318 {offsets = [0, 64], sizes = [1, 32], strides = [1, 1]} : vector<1x128xf32> to vector<1x32xf32>
    %cst_115 = arith.constant 2.000000e+00 : f32
    %322 = vector.broadcast %cst_115 : f32 to vector<1x32xf32>
    %323 = arith.mulf %322, %321 : vector<1x32xf32>
    %cst_116 = arith.constant 1.000000e+00 : f32
    %324 = vector.broadcast %cst_116 : f32 to vector<1x32xf32>
    %325 = arith.subf %323, %324 : vector<1x32xf32>
    %326 = vector.extract_strided_slice %318 {offsets = [0, 96], sizes = [1, 32], strides = [1, 1]} : vector<1x128xf32> to vector<1x32xf32>
    %327 = arith.mulf %320, %282 : vector<1x32xf32>
    %328 = arith.mulf %319, %325 : vector<1x32xf32>
    %329 = arith.addf %327, %328 : vector<1x32xf32>
    %330 = math.tanh %329 : vector<1x32xf32>
    %331 = arith.mulf %326, %330 : vector<1x32xf32>
    %332 = arith.truncf %308 : vector<1x32xf32> to vector<1x32xbf16>
    %cst_117 = arith.constant dense<0.000000e+00> : vector<1x128xf32>
    %333 = tpu.matmul %332, %11, %cst_117 {dimension_numbers = #tpu.dot_dimension_numbers<[1], [0], [0], [1], [0, 0, 1, 1], [], []>} : vector<1x32xbf16>, vector<32x128xbf16>, vector<1x128xf32> -> vector<1x128xf32>
    %334 = arith.truncf %331 : vector<1x32xf32> to vector<1x32xbf16>
    %cst_118 = arith.constant dense<0.000000e+00> : vector<1x128xf32>
    %335 = tpu.matmul %334, %13, %cst_118 {dimension_numbers = #tpu.dot_dimension_numbers<[1], [0], [0], [1], [0, 0, 1, 1], [], []>} : vector<1x32xbf16>, vector<32x128xbf16>, vector<1x128xf32> -> vector<1x128xf32>
    %336 = arith.addf %335, %333 : vector<1x128xf32>
    %337 = arith.addf %336, %15 : vector<1x128xf32>
    %338 = arith.negf %337 : vector<1x128xf32>
    %339 = math.exp %338 : vector<1x128xf32>
    %cst_119 = arith.constant 1.000000e+00 : f32
    %340 = vector.broadcast %cst_119 : f32 to vector<1x128xf32>
    %341 = arith.addf %340, %339 : vector<1x128xf32>
    %342 = arith.divf %340, %341 : vector<1x128xf32>
    %343 = vector.extract_strided_slice %342 {offsets = [0, 0], sizes = [1, 32], strides = [1, 1]} : vector<1x128xf32> to vector<1x32xf32>
    %344 = vector.extract_strided_slice %342 {offsets = [0, 32], sizes = [1, 32], strides = [1, 1]} : vector<1x128xf32> to vector<1x32xf32>
    %345 = vector.extract_strided_slice %342 {offsets = [0, 64], sizes = [1, 32], strides = [1, 1]} : vector<1x128xf32> to vector<1x32xf32>
    %cst_120 = arith.constant 2.000000e+00 : f32
    %346 = vector.broadcast %cst_120 : f32 to vector<1x32xf32>
    %347 = arith.mulf %346, %345 : vector<1x32xf32>
    %cst_121 = arith.constant 1.000000e+00 : f32
    %348 = vector.broadcast %cst_121 : f32 to vector<1x32xf32>
    %349 = arith.subf %347, %348 : vector<1x32xf32>
    %350 = vector.extract_strided_slice %342 {offsets = [0, 96], sizes = [1, 32], strides = [1, 1]} : vector<1x128xf32> to vector<1x32xf32>
    %351 = arith.mulf %344, %306 : vector<1x32xf32>
    %352 = arith.mulf %343, %349 : vector<1x32xf32>
    %353 = arith.addf %351, %352 : vector<1x32xf32>
    %354 = math.tanh %353 : vector<1x32xf32>
    %355 = arith.mulf %350, %354 : vector<1x32xf32>
    %c6_122 = arith.constant 6 : index
    %c0_123 = arith.constant 0 : index
    %356 = vector.load %arg13[%c6_122, %c0_123] : memref<8x32xf32, #tpu.memory_space<vmem>>, vector<1x32xf32>
    tpu.vector_store %arg13[%c6_122, %c0_123], %355 {strides = array<i32>} : memref<8x32xf32, #tpu.memory_space<vmem>>, vector<1x32xf32>,
    %357 = arith.truncf %331 : vector<1x32xf32> to vector<1x32xbf16>
    %cst_124 = arith.constant dense<0.000000e+00> : vector<1x128xf32>
    %358 = tpu.matmul %357, %9, %cst_124 {dimension_numbers = #tpu.dot_dimension_numbers<[1], [0], [0], [1], [0, 0, 1, 1], [], []>} : vector<1x32xbf16>, vector<32x128xbf16>, vector<1x128xf32> -> vector<1x128xf32>
    %c7 = arith.constant 7 : index
    %c0_125 = arith.constant 0 : index
    %359 = vector.load %arg12[%c7, %c0_125] : memref<8x128xf32, #tpu.memory_space<vmem>>, vector<1x128xf32>
    %360 = arith.addf %359, %358 : vector<1x128xf32>
    %361 = arith.negf %360 : vector<1x128xf32>
    %362 = math.exp %361 : vector<1x128xf32>
    %cst_126 = arith.constant 1.000000e+00 : f32
    %363 = vector.broadcast %cst_126 : f32 to vector<1x128xf32>
    %364 = arith.addf %363, %362 : vector<1x128xf32>
    %365 = arith.divf %363, %364 : vector<1x128xf32>
    %366 = vector.extract_strided_slice %365 {offsets = [0, 0], sizes = [1, 32], strides = [1, 1]} : vector<1x128xf32> to vector<1x32xf32>
    %367 = vector.extract_strided_slice %365 {offsets = [0, 32], sizes = [1, 32], strides = [1, 1]} : vector<1x128xf32> to vector<1x32xf32>
    %368 = vector.extract_strided_slice %365 {offsets = [0, 64], sizes = [1, 32], strides = [1, 1]} : vector<1x128xf32> to vector<1x32xf32>
    %cst_127 = arith.constant 2.000000e+00 : f32
    %369 = vector.broadcast %cst_127 : f32 to vector<1x32xf32>
    %370 = arith.mulf %369, %368 : vector<1x32xf32>
    %cst_128 = arith.constant 1.000000e+00 : f32
    %371 = vector.broadcast %cst_128 : f32 to vector<1x32xf32>
    %372 = arith.subf %370, %371 : vector<1x32xf32>
    %373 = vector.extract_strided_slice %365 {offsets = [0, 96], sizes = [1, 32], strides = [1, 1]} : vector<1x128xf32> to vector<1x32xf32>
    %374 = arith.mulf %367, %329 : vector<1x32xf32>
    %375 = arith.mulf %366, %372 : vector<1x32xf32>
    %376 = arith.addf %374, %375 : vector<1x32xf32>
    %377 = math.tanh %376 : vector<1x32xf32>
    %378 = arith.mulf %373, %377 : vector<1x32xf32>
    %379 = arith.truncf %355 : vector<1x32xf32> to vector<1x32xbf16>
    %cst_129 = arith.constant dense<0.000000e+00> : vector<1x128xf32>
    %380 = tpu.matmul %379, %11, %cst_129 {dimension_numbers = #tpu.dot_dimension_numbers<[1], [0], [0], [1], [0, 0, 1, 1], [], []>} : vector<1x32xbf16>, vector<32x128xbf16>, vector<1x128xf32> -> vector<1x128xf32>
    %381 = arith.truncf %378 : vector<1x32xf32> to vector<1x32xbf16>
    %cst_130 = arith.constant dense<0.000000e+00> : vector<1x128xf32>
    %382 = tpu.matmul %381, %13, %cst_130 {dimension_numbers = #tpu.dot_dimension_numbers<[1], [0], [0], [1], [0, 0, 1, 1], [], []>} : vector<1x32xbf16>, vector<32x128xbf16>, vector<1x128xf32> -> vector<1x128xf32>
    %383 = arith.addf %382, %380 : vector<1x128xf32>
    %384 = arith.addf %383, %15 : vector<1x128xf32>
    %385 = arith.negf %384 : vector<1x128xf32>
    %386 = math.exp %385 : vector<1x128xf32>
    %cst_131 = arith.constant 1.000000e+00 : f32
    %387 = vector.broadcast %cst_131 : f32 to vector<1x128xf32>
    %388 = arith.addf %387, %386 : vector<1x128xf32>
    %389 = arith.divf %387, %388 : vector<1x128xf32>
    %390 = vector.extract_strided_slice %389 {offsets = [0, 0], sizes = [1, 32], strides = [1, 1]} : vector<1x128xf32> to vector<1x32xf32>
    %391 = vector.extract_strided_slice %389 {offsets = [0, 32], sizes = [1, 32], strides = [1, 1]} : vector<1x128xf32> to vector<1x32xf32>
    %392 = vector.extract_strided_slice %389 {offsets = [0, 64], sizes = [1, 32], strides = [1, 1]} : vector<1x128xf32> to vector<1x32xf32>
    %cst_132 = arith.constant 2.000000e+00 : f32
    %393 = vector.broadcast %cst_132 : f32 to vector<1x32xf32>
    %394 = arith.mulf %393, %392 : vector<1x32xf32>
    %cst_133 = arith.constant 1.000000e+00 : f32
    %395 = vector.broadcast %cst_133 : f32 to vector<1x32xf32>
    %396 = arith.subf %394, %395 : vector<1x32xf32>
    %397 = vector.extract_strided_slice %389 {offsets = [0, 96], sizes = [1, 32], strides = [1, 1]} : vector<1x128xf32> to vector<1x32xf32>
    %398 = arith.mulf %391, %353 : vector<1x32xf32>
    %399 = arith.mulf %390, %396 : vector<1x32xf32>
    %400 = arith.addf %398, %399 : vector<1x32xf32>
    %401 = math.tanh %400 : vector<1x32xf32>
    %402 = arith.mulf %397, %401 : vector<1x32xf32>
    %c7_134 = arith.constant 7 : index
    %c0_135 = arith.constant 0 : index
    %403 = vector.load %arg13[%c7_134, %c0_135] : memref<8x32xf32, #tpu.memory_space<vmem>>, vector<1x32xf32>
    tpu.vector_store %arg13[%c7_134, %c0_135], %402 {strides = array<i32>} : memref<8x32xf32, #tpu.memory_space<vmem>>, vector<1x32xf32>,
    %c0_136 = arith.constant 0 : index
    %c0_137 = arith.constant 0 : index
    %404 = vector.load %arg13[%c0_136, %c0_137] : memref<8x32xf32, #tpu.memory_space<vmem>>, vector<8x32xf32>
    %cst_138 = arith.constant dense<0.000000e+00> : vector<8x128xf32>
    %405 = tpu.matmul %404, %16, %cst_138 {dimension_numbers = #tpu.dot_dimension_numbers<[1], [0], [0], [1], [0, 0, 1, 1], [], []>} : vector<8x32xf32>, vector<32x128xf32>, vector<8x128xf32> -> vector<8x128xf32>
    %406 = vector.broadcast %17 : vector<1x128xf32> to vector<8x128xf32>
    %407 = arith.addf %405, %406 : vector<8x128xf32>
    %c0_139 = arith.constant 0 : index
    %c0_140 = arith.constant 0 : index
    %408 = vector.load %arg9[%c0_139, %c0_140] : memref<8x128xf32, #tpu.memory_space<vmem>>, vector<8x128xf32>
    tpu.vector_store %arg9[%c0_139, %c0_140], %407 {strides = array<i32>} : memref<8x128xf32, #tpu.memory_space<vmem>>, vector<8x128xf32>,
    %409 = tpu.iota {dimensions = array<i32: 0>} : vector<8x8xi32>
    %410 = tpu.iota {dimensions = array<i32: 1>} : vector<8x8xi32>
    %411 = arith.cmpi sle, %410, %409 : vector<8x8xi32>
    %412 = arith.extui %411 : vector<8x8xi1> to vector<8x8xi32>
    %413 = arith.sitofp %412 : vector<8x8xi32> to vector<8x8xf32>
    %c0_141 = arith.constant 0 : index
    %c0_142 = arith.constant 0 : index
    %414 = vector.load %arg8[%c0_141, %c0_142] : memref<1x128xf32, #tpu.memory_space<vmem>>, vector<1x128xf32>
    %cst_143 = arith.constant dense<0.000000e+00> : vector<8x128xf32>
    %415 = tpu.matmul %413, %407, %cst_143 {dimension_numbers = #tpu.dot_dimension_numbers<[1], [0], [0], [1], [0, 0, 1, 1], [], []>} : vector<8x8xf32>, vector<8x128xf32>, vector<8x128xf32> -> vector<8x128xf32>
    %416 = vector.broadcast %414 : vector<1x128xf32> to vector<8x128xf32>
    %417 = arith.addf %416, %415 : vector<8x128xf32>
    %c0_144 = arith.constant 0 : index
    %c0_145 = arith.constant 0 : index
    %418 = vector.load %arg10[%c0_144, %c0_145] : memref<8x128xf32, #tpu.memory_space<vmem>>, vector<8x128xf32>
    tpu.vector_store %arg10[%c0_144, %c0_145], %417 {strides = array<i32>} : memref<8x128xf32, #tpu.memory_space<vmem>>, vector<8x128xf32>,
    %c0_146 = arith.constant 0 : index
    %c0_147 = arith.constant 0 : index
    %c0_148 = arith.constant 0 : index
    %419 = vector.load %arg11[%c0_146, %c0_147, %c0_148] : memref<4x1x32xf32, #tpu.memory_space<vmem>>, vector<1x1x32xf32>
    %420 = vector.shape_cast %419 : vector<1x1x32xf32> to vector<1x32xf32>
    %421 = vector.shape_cast %378 : vector<1x32xf32> to vector<1x1x32xf32>
    tpu.vector_store %arg11[%c0_146, %c0_147, %c0_148], %421 {strides = array<i32>} : memref<4x1x32xf32, #tpu.memory_space<vmem>>, vector<1x1x32xf32>,
    %c1_149 = arith.constant 1 : index
    %c0_150 = arith.constant 0 : index
    %c0_151 = arith.constant 0 : index
    %422 = vector.load %arg11[%c1_149, %c0_150, %c0_151] : memref<4x1x32xf32, #tpu.memory_space<vmem>>, vector<1x1x32xf32>
    %423 = vector.shape_cast %422 : vector<1x1x32xf32> to vector<1x32xf32>
    %424 = vector.shape_cast %376 : vector<1x32xf32> to vector<1x1x32xf32>
    tpu.vector_store %arg11[%c1_149, %c0_150, %c0_151], %424 {strides = array<i32>} : memref<4x1x32xf32, #tpu.memory_space<vmem>>, vector<1x1x32xf32>,
    %c2_152 = arith.constant 2 : index
    %c0_153 = arith.constant 0 : index
    %c0_154 = arith.constant 0 : index
    %425 = vector.load %arg11[%c2_152, %c0_153, %c0_154] : memref<4x1x32xf32, #tpu.memory_space<vmem>>, vector<1x1x32xf32>
    %426 = vector.shape_cast %425 : vector<1x1x32xf32> to vector<1x32xf32>
    %427 = vector.shape_cast %402 : vector<1x32xf32> to vector<1x1x32xf32>
    tpu.vector_store %arg11[%c2_152, %c0_153, %c0_154], %427 {strides = array<i32>} : memref<4x1x32xf32, #tpu.memory_space<vmem>>, vector<1x1x32xf32>,
    %c3_155 = arith.constant 3 : index
    %c0_156 = arith.constant 0 : index
    %c0_157 = arith.constant 0 : index
    %428 = vector.load %arg11[%c3_155, %c0_156, %c0_157] : memref<4x1x32xf32, #tpu.memory_space<vmem>>, vector<1x1x32xf32>
    %429 = vector.shape_cast %428 : vector<1x1x32xf32> to vector<1x32xf32>
    %430 = vector.shape_cast %400 : vector<1x32xf32> to vector<1x1x32xf32>
    tpu.vector_store %arg11[%c3_155, %c0_156, %c0_157], %430 {strides = array<i32>} : memref<4x1x32xf32, #tpu.memory_space<vmem>>, vector<1x1x32xf32>,
    return
  }
}

</mosaic_0001>

<llo_original>
// kernel: step.1
$region0: #{step.1}
  #allocation0 [shape = 'u32[]', space=smem, size = 0x4, offset = 0x4, fixed_abs, tag = 'smem constant byte address 0x4 - core index']
  #allocation1 [shape = 'u32[144,128]{1,0:T(1,128)}', space=vmem, size = 0x12000, scoped, tag = 'internal scratch']
  #allocation2 [shape = 'f32[8,128]{1,0:T(8,128)}', space=vmem, size = 0x1000, scoped, tag = 'scratch operand']
  #allocation3 [shape = 'f32[8,32]{1,0:T(8,128)}', space=vmem, size = 0x1000, scoped, tag = 'scratch operand']
  %s0 = inlined_call_operand.hbm [shape: f32[8,8], index: 0, kind: input, shape index: {}]
  %s1 = inlined_call_operand.hbm [shape: f32[8,128], index: 1, kind: input, shape index: {}]
  %s2 = inlined_call_operand.hbm [shape: bf16[2,32,128], index: 2, kind: input, shape index: {}]
  %s3 = inlined_call_operand.hbm [shape: bf16[2,32,128], index: 3, kind: input, shape index: {}]
  %s4 = inlined_call_operand.vmem [shape: f32[2,1,128], index: 4, kind: input, shape index: {}]
  %s5 = inlined_call_operand.hbm [shape: f32[32,128], index: 5, kind: input, shape index: {}]
  %s6 = inlined_call_operand.vmem [shape: f32[1,128], index: 6, kind: input, shape index: {}]
  %s7 = inlined_call_operand.vmem [shape: f32[4,1,32], index: 7, kind: input, shape index: {}]
  %s8 = inlined_call_operand.vmem [shape: f32[1,128], index: 8, kind: input, shape index: {}]
  %s9 = inlined_call_operand.hbm [shape: f32[8,128], index: 9, kind: output, shape index: {0}]
  %s10 = inlined_call_operand.hbm [shape: f32[8,128], index: 10, kind: output, shape index: {1}]
  %s11 = inlined_call_operand.hbm [shape: f32[4,1,32], index: 11, kind: output, shape index: {2}]
  %12 = xla_tuple %s9, %s10, %s11
  %s13 = sld [smem:[#allocation0]]
  $region82: #{step.1} parent=0
    _
  %s15 = ssub.s32 1, %s13
  %s16 = scalar_select 0, %s15, %s13
  $region1: #{step.1} parent=0
    #allocation4 [shape = 'u8[4096]{0}', space=vmem, size = 0x1000, scoped, tag = 'input window, operand 0, single buffered']
    #allocation5 [shape = 's32[1]{0}', space=sflag, size = 0x4, scoped, tag = 'scoped memory for step.1']
    #allocation6 [shape = 's32[1]{0}', space=sflag, size = 0x4, scoped, tag = 'scoped memory for step.1']
    #allocation7 [shape = 'u8[4096]{0}', space=vmem, size = 0x1000, scoped, tag = 'input window, operand 1, single buffered']
    #allocation8 [shape = 's32[1]{0}', space=sflag, size = 0x4, scoped, tag = 'scoped memory for step.1']
    #allocation9 [shape = 'u8[16384]{0}', space=vmem, size = 0x4000, scoped, tag = 'input window, operand 2, single buffered']
    #allocation10 [shape = 'u8[16384]{0}', space=vmem, size = 0x4000, scoped, tag = 'input window, operand 3, single buffered']
    #allocation11 [shape = 's32[1]{0}', space=sflag, size = 0x4, scoped, tag = 'scoped memory for step.1']
    #allocation12 [shape = 'u8[16384]{0}', space=vmem, size = 0x4000, scoped, tag = 'input window, operand 5, single buffered']
    #allocation13 [shape = 'u8[4096]{0}', space=vmem, size = 0x1000, scoped, tag = 'output window, operand 0, single buffered']
    #allocation14 [shape = 'u8[4096]{0}', space=vmem, size = 0x1000, scoped, tag = 'output window, operand 1, single buffered']
    #allocation15 [shape = 's32[1]{0}', space=sflag, size = 0x4, scoped, tag = 'scoped memory for step.1']
    #allocation16 [shape = 'u8[2048]{0}', space=vmem, size = 0x800, scoped, tag = 'output window, operand 2, single buffered']
    %17 = vsyncpa [#allocation5], 0
    %18 = vsyncpa [#allocation8], 0
    %19 = vsyncpa [#allocation11], 0
    %20 = vsyncpa [#allocation6], 0
    %21 = vsyncpa [#allocation15], 0
    // Predicated region
    $region2: #{step.1} parent=1 // pred_check
      _
    $region3: #{step.1} parent=1 // pred_check_branch
      %23 = sbr.rel (0) target = $region5
    $region4: #{step.1} parent=1 // pred_region
      %s25 = ssub.s32 128, 128
      %26 = vsyncadd [#allocation5], %s25
      %s28 = sshll.u32 [#allocation4], 4
      %s29 = int_to_ptr.vmem [resolvable:$true] %s28
      %31 = dma.hbm_to_vmem [thread:$0]  %s0, 128, %s29, [#allocation5]
    $region5: #{step.1} parent=1 // pred_fallthru
      _
    // Predicated region
    $region6: #{step.1} parent=1 // pred_check
      _
    $region7: #{step.1} parent=1 // pred_check_branch
      %33 = sbr.rel (0) target = $region9
    $region8: #{step.1} parent=1 // pred_region
      %s35 = ssub.s32 128, 128
      %36 = vsyncadd [#allocation8], %s35
      %s38 = sshll.u32 [#allocation7], 4
      %s39 = int_to_ptr.vmem [resolvable:$true] %s38
      %41 = dma.hbm_to_vmem [thread:$0]  %s1, 128, %s39, [#allocation8]
    $region9: #{step.1} parent=1 // pred_fallthru
      _
    // Predicated region
    $region10: #{step.1} parent=1 // pred_check
      _
    $region11: #{step.1} parent=1 // pred_check_branch
      %43 = sbr.rel (0) target = $region13
    $region12: #{step.1} parent=1 // pred_region
      %s45 = ssub.s32 512, 512
      %46 = vsyncadd [#allocation8], %s45
      %s47 = sshll.u32 [#allocation9], 4
      %s48 = int_to_ptr.vmem [resolvable:$true] %s47
      %53 = dma.hbm_to_vmem [thread:$0]  %s2, 512, %s48, [#allocation8], 64, 64, 4
    $region13: #{step.1} parent=1 // pred_fallthru
      _
    // Predicated region
    $region14: #{step.1} parent=1 // pred_check
      _
    $region15: #{step.1} parent=1 // pred_check_branch
      %55 = sbr.rel (0) target = $region17
    $region16: #{step.1} parent=1 // pred_region
      %s57 = ssub.s32 512, 512
      %58 = vsyncadd [#allocation11], %s57
      %s59 = sshll.u32 [#allocation10], 4
      %s60 = int_to_ptr.vmem [resolvable:$true] %s59
      %65 = dma.hbm_to_vmem [thread:$0]  %s3, 512, %s60, [#allocation11], 64, 64, 4
    $region17: #{step.1} parent=1 // pred_fallthru
      _
    // Predicated region
    $region18: #{step.1} parent=1 // pred_check
      _
    $region19: #{step.1} parent=1 // pred_check_branch
      %67 = sbr.rel (0) target = $region21
    $region20: #{step.1} parent=1 // pred_region
      _
    $region21: #{step.1} parent=1 // pred_fallthru
      _
    // Predicated region
    $region22: #{step.1} parent=1 // pred_check
      _
    $region23: #{step.1} parent=1 // pred_check_branch
      %69 = sbr.rel (0) target = $region25
    $region24: #{step.1} parent=1 // pred_region
      %s71 = ssub.s32 512, 512
      %72 = vsyncadd [#allocation11], %s71
      %s73 = sshll.u32 [#allocation12], 4
      %s74 = int_to_ptr.vmem [resolvable:$true] %s73
      %79 = dma.hbm_to_vmem [thread:$0]  %s5, 512, %s74, [#allocation11], 128, 128, 8
    $region25: #{step.1} parent=1 // pred_fallthru
      _
    // Predicated region
    $region26: #{step.1} parent=1 // pred_check
      _
    $region27: #{step.1} parent=1 // pred_check_branch
      %81 = sbr.rel (0) target = $region29
    $region28: #{step.1} parent=1 // pred_region
      _
    $region29: #{step.1} parent=1 // pred_fallthru
      _
    // Predicated region
    $region30: #{step.1} parent=1 // pred_check
      _
    $region31: #{step.1} parent=1 // pred_check_branch
      %83 = sbr.rel (0) target = $region33
    $region32: #{step.1} parent=1 // pred_region
      _
    $region33: #{step.1} parent=1 // pred_fallthru
      _
    // Predicated region
    $region34: #{step.1} parent=1 // pred_check
      _
    $region35: #{step.1} parent=1 // pred_check_branch
      %85 = sbr.rel (0) target = $region37
    $region36: #{step.1} parent=1 // pred_region
      _
    $region37: #{step.1} parent=1 // pred_fallthru
      _
    // Predicated region
    $region38: #{step.1} parent=1 // pred_check
      _
    $region39: #{step.1} parent=1 // pred_check_branch
      %87 = sbr.rel (0) target = $region41
    $region40: #{step.1} parent=1 // pred_region
      %88 = dma.done [#allocation5], 128
    $region41: #{step.1} parent=1 // pred_fallthru
      _
    // Predicated region
    $region42: #{step.1} parent=1 // pred_check
      _
    $region43: #{step.1} parent=1 // pred_check_branch
      %90 = sbr.rel (0) target = $region45
    $region44: #{step.1} parent=1 // pred_region
      %91 = dma.done [#allocation8], 128
    $region45: #{step.1} parent=1 // pred_fallthru
      _
    // Predicated region
    $region46: #{step.1} parent=1 // pred_check
      _
    $region47: #{step.1} parent=1 // pred_check_branch
      %93 = sbr.rel (0) target = $region49
    $region48: #{step.1} parent=1 // pred_region
      %94 = dma.done [#allocation8], 512
    $region49: #{step.1} parent=1 // pred_fallthru
      _
    // Predicated region
    $region50: #{step.1} parent=1 // pred_check
      _
    $region51: #{step.1} parent=1 // pred_check_branch
      %96 = sbr.rel (0) target = $region53
    $region52: #{step.1} parent=1 // pred_region
      %97 = dma.done [#allocation11], 512
    $region53: #{step.1} parent=1 // pred_fallthru
      _
    // Predicated region
    $region54: #{step.1} parent=1 // pred_check
      _
    $region55: #{step.1} parent=1 // pred_check_branch
      %99 = sbr.rel (0) target = $region57
    $region56: #{step.1} parent=1 // pred_region
      %100 = dma.done [#allocation11], 512
    $region57: #{step.1} parent=1 // pred_fallthru
      _
    %v102 = vld [vmem:[#allocation4] sm:$0xff]
    %v103 = vld [vmem:[#allocation7] sm:$0xff]
    %v104 = vld [vmem:[%s4] sm:$0x1]
    %v106 = vlaneseq
    %v107 = vshrl.u32 %v106, 7
    %v108 = vsub.s32 0, %v107
    %v109 = vrot.slane %v104, %v108
    %vm111 = vcmask 64512
    %v113 = vsel %vm111, %v102, 0
    %115 = vmatprep.subr.mxu0 0.0
    %116 = vmatpush1.msra.mxu0 %v103
    %117 = vmatprep.subr.mxu0 0.0
    %118 = vmatpush1.msra.mxu0 0.0
    %119 = vmatprep.subr.mxu0 0.0
    %120 = vmatpush1.msra.mxu0 0.0
    %121 = vmatprep.subr.mxu0 0.0
    %122 = vmatpush1.msra.mxu0 0.0
    %123 = vmatprep.subr.mxu0 0.0
    %124 = vmatpush1.msra.mxu0 0.0
    %125 = vmatprep.subr.mxu0 0.0
    %126 = vmatpush1.msra.mxu0 0.0
    %127 = vmatprep.subr.mxu0 0.0
    %128 = vmatpush1.msra.mxu0 0.0
    %129 = vmatprep.subr.mxu0 0.0
    %130 = vmatpush1.msra.mxu0 0.0
    %131 = vmatprep.subr.mxu0 0.0
    %132 = vmatpush1.msra.mxu0 0.0
    %133 = vmatprep.subr.mxu0 0.0
    %134 = vmatpush1.msra.mxu0 0.0
    %135 = vmatprep.subr.mxu0 0.0
    %136 = vmatpush1.msra.mxu0 0.0
    %137 = vmatprep.subr.mxu0 0.0
    %138 = vmatpush1.msra.mxu0 0.0
    %139 = vmatprep.subr.mxu0 0.0
    %140 = vmatpush1.msra.mxu0 0.0
    %141 = vmatprep.subr.mxu0 0.0
    %142 = vmatpush1.msra.mxu0 0.0
    %143 = vmatprep.subr.mxu0 0.0
    %144 = vmatpush1.msra.mxu0 0.0
    %145 = vmatprep.subr.mxu0 0.0
    %146 = vmatpush1.msra.mxu0 0.0
    %147 = vmatprep.subr.mxu0 0.0
    %148 = vmatpush1.msra.mxu0 0.0
    %149 = vmatprep.subr.mxu0 0.0
    %150 = vmatpush1.msra.mxu0 0.0
    %151 = vmatprep.subr.mxu0 0.0
    %152 = vmatpush1.msra.mxu0 0.0
    %153 = vmatprep.subr.mxu0 0.0
    %154 = vmatpush1.msra.mxu0 0.0
    %155 = vmatprep.subr.mxu0 0.0
    %156 = vmatpush1.msra.mxu0 0.0
    %157 = vmatprep.subr.mxu0 0.0
    %158 = vmatpush1.msra.mxu0 0.0
    %159 = vmatprep.subr.mxu0 0.0
    %160 = vmatpush1.msra.mxu0 0.0
    %161 = vmatprep.subr.mxu0 0.0
    %162 = vmatpush1.msra.mxu0 0.0
    %163 = vmatprep.subr.mxu0 0.0
    %164 = vmatpush1.msra.mxu0 0.0
    %165 = vmatprep.subr.mxu0 0.0
    %166 = vmatpush1.msra.mxu0 0.0
    %167 = vmatprep.subr.mxu0 0.0
    %168 = vmatpush1.msra.mxu0 0.0
    %169 = vmatprep.subr.mxu0 0.0
    %170 = vmatpush1.msra.mxu0 0.0
    %171 = vmatprep.subr.mxu0 0.0
    %172 = vmatpush1.msra.mxu0 0.0
    %173 = vmatprep.subr.mxu0 0.0
    %174 = vmatpush1.msra.mxu0 0.0
    %175 = vmatprep.subr.mxu0 0.0
    %176 = vmatpush1.msra.mxu0 0.0
    %177 = vmatprep.subr.mxu0 0.0
    %178 = vmatpush1.msra.mxu0 0.0
    %179 = vmatprep.mubr.f32.mxu0 0.0
    %180 = vmatmul.mubr.f32.gmra.mrb[0].mxu0 %v113
    %v181 = vpop.f32.mrb[0].mxu0
    %v182 = vadd.f32 %v109, %v181
    %v183 = vpop.f32.mrb[0].mxu0
    %184 = vdwg.mxu0
    %185 = vst [vmem:[#allocation2] sm:$0xff] %v182
    %v186 = vld [vmem:[#allocation10] sm:$0xf]
    %v187 = vld [vmem:[#allocation10 + $0x4] sm:$0xf]
    %v188 = vld [vmem:[#allocation10 + $0x8] sm:$0xf]
    %v189 = vld [vmem:[#allocation10 + $0xc] sm:$0xf]
    %s190 = scalar_lea.vmem [#allocation10], 16
    %v191 = vld [vmem:[%s190] sm:$0xf]
    %v192 = vld [vmem:[%s190 + $0x4] sm:$0xf]
    %v193 = vld [vmem:[%s190 + $0x8] sm:$0xf]
    %v194 = vld [vmem:[%s190 + $0xc] sm:$0xf]
    %s195 = scalar_lea.vmem [#allocation9], 16
    %v196 = vld [vmem:[%s195] sm:$0xf]
    %v197 = vld [vmem:[%s195 + $0x4] sm:$0xf]
    %v198 = vld [vmem:[%s195 + $0x8] sm:$0xf]
    %v199 = vld [vmem:[%s195 + $0xc] sm:$0xf]
    %s200 = scalar_lea.vmem %s4, 1
    %v201 = vld [vmem:[%s200] sm:$0x1]
    %v202 = vld [vmem:[#allocation12] sm:$0xff]
    %v203 = vld [vmem:[#allocation12 + $0x8] sm:$0xff]
    %v204 = vld [vmem:[#allocation12 + $0x10] sm:$0xff]
    %v205 = vld [vmem:[#allocation12 + $0x18] sm:$0xff]
    %v206 = vld [vmem:[%s6] sm:$0x1]
    %v207 = vld [vmem:[%s7] sm:$0x1]
    %s208 = scalar_lea.vmem %s7, 2
    %v209 = vld [vmem:[%s208] sm:$0x1]
    %s210 = scalar_lea.vmem %s7, 1
    %v211 = vld [vmem:[%s210] sm:$0x1]
    %s212 = scalar_lea.vmem %s7, 3
    %v213 = vld [vmem:[%s212] sm:$0x1]
    %vm214 = vcmask 261120
    %215 = vst.msk [vmem:[#allocation3] sm:$0xff] %vm214, 0.0
    %v216 = vpack.c.bf16 %v207, %v207
    %v221 = vunpack.c.l.b16 %v186
    %v222 = vunpack.c.l.b16 %v187
    %v223 = vunpack.c.l.b16 %v188
    %v224 = vunpack.c.l.b16 %v189
    %v225 = vpack.c.b16 %v222, %v221
    %v226 = vpack.c.b16 %v224, %v223
    %v230 = vsel %vm214, %v216, 0
    %232 = vmatprep.subr.bf16.mxu0 0
    %233 = vmatpush1.bf16.msra.mxu0 %v225
    %234 = vmatprep.subr.bf16.mxu0 0
    %235 = vmatpush1.bf16.msra.mxu0 %v226
    %236 = vmatprep.subr.bf16.mxu0 0
    %237 = vmatpush1.bf16.msra.mxu0 0
    %238 = vmatprep.subr.bf16.mxu0 0
    %239 = vmatpush1.bf16.msra.mxu0 0
    %240 = vmatprep.subr.bf16.mxu0 0
    %241 = vmatpush1.bf16.msra.mxu0 0
    %242 = vmatprep.subr.bf16.mxu0 0
    %243 = vmatpush1.bf16.msra.mxu0 0
    %244 = vmatprep.subr.bf16.mxu0 0
    %245 = vmatpush1.bf16.msra.mxu0 0
    %246 = vmatprep.subr.bf16.mxu0 0
    %247 = vmatpush1.bf16.msra.mxu0 0
    %248 = vmatprep.subr.bf16.mxu0 0
    %249 = vmatpush1.bf16.msra.mxu0 0
    %250 = vmatprep.subr.bf16.mxu0 0
    %251 = vmatpush1.bf16.msra.mxu0 0
    %252 = vmatprep.subr.bf16.mxu0 0
    %253 = vmatpush1.bf16.msra.mxu0 0
    %254 = vmatprep.subr.bf16.mxu0 0
    %255 = vmatpush1.bf16.msra.mxu0 0
    %256 = vmatprep.subr.bf16.mxu0 0
    %257 = vmatpush1.bf16.msra.mxu0 0
    %258 = vmatprep.subr.bf16.mxu0 0
    %259 = vmatpush1.bf16.msra.mxu0 0
    %260 = vmatprep.subr.bf16.mxu0 0
    %261 = vmatpush1.bf16.msra.mxu0 0
    %262 = vmatprep.subr.bf16.mxu0 0
    %263 = vmatpush1.bf16.msra.mxu0 0
    %264 = vmatprep.mubr.bf16.mxu0 0
    %265 = vmatmul.mubr.bf16.gmra.mrb[0].mxu0 %v230
    %v266 = vpop.f32.mrb[0].mxu0
    %v267 = vadd.f32 0.0, %v266
    %v268 = vpop.f32.mrb[0].mxu0
    %v269 = vpop.f32.mrb[0].mxu0
    %v270 = vpop.f32.mrb[0].mxu0
    %271 = vdwg.mxu0
    %v272 = vld [vmem:[#allocation2] sm:$0x1]
    %v273 = vadd.f32 %v272, %v267
    %v274 = vxor.u32 %v273, 2147483648
    %v275 = vmul.f32 %v274, 1.442695
    %v276 = vpow.pop %v275
    %v277 = vadd.f32 %v276, 1.0
    %v278 = vrcp.pop %v277
    %v279 = vmul.f32 1.0, %v278
    %v280 = vmul.f32 %v279, 2.0
    %v281 = vsub.f32 %v280, 1.0
    %v283 = vlaneseq
    %v284 = vshrl.u32 %v283, 7
    %v285 = vsub.s32 0, %v284
    %v286 = vrot.slane %v211, %v285
    %287 = vrot.lane.b32.xlu0 %v286, 32
    %v288 = vpop.permute.xlu0 %287
    %v290 = vmul.f32 %v279, %v288
    %292 = vrot.lane.b32.xlu0 %v281, 64
    %v293 = vpop.permute.xlu0 %292
    %v295 = vmul.f32 %v279, %v293
    %297 = vrot.lane.b32.xlu0 %v295, 32
    %v298 = vpop.permute.xlu0 %297
    %v300 = vadd.f32 %v290, %v298
    %v301 = vtanh.pop %v300
    %303 = vrot.lane.b32.xlu0 %v301, 64
    %v304 = vpop.permute.xlu0 %303
    %v306 = vmul.f32 %v279, %v304
    %v307 = vpack.c.bf16 %v209, %v209
    %v312 = vunpack.c.l.b16 %v191
    %v313 = vunpack.c.l.b16 %v192
    %v314 = vunpack.c.l.b16 %v193
    %v315 = vunpack.c.l.b16 %v194
    %v316 = vpack.c.b16 %v313, %v312
    %v317 = vpack.c.b16 %v315, %v314
    %v321 = vsel %vm214, %v307, 0
    %323 = vmatprep.subr.bf16.mxu0 0
    %324 = vmatpush1.bf16.msra.mxu0 %v316
    %325 = vmatprep.subr.bf16.mxu0 0
    %326 = vmatpush1.bf16.msra.mxu0 %v317
    %327 = vmatprep.subr.bf16.mxu0 0
    %328 = vmatpush1.bf16.msra.mxu0 0
    %329 = vmatprep.subr.bf16.mxu0 0
    %330 = vmatpush1.bf16.msra.mxu0 0
    %331 = vmatprep.subr.bf16.mxu0 0
    %332 = vmatpush1.bf16.msra.mxu0 0
    %333 = vmatprep.subr.bf16.mxu0 0
    %334 = vmatpush1.bf16.msra.mxu0 0
    %335 = vmatprep.subr.bf16.mxu0 0
    %336 = vmatpush1.bf16.msra.mxu0 0
    %337 = vmatprep.subr.bf16.mxu0 0
    %338 = vmatpush1.bf16.msra.mxu0 0
    %339 = vmatprep.subr.bf16.mxu0 0
    %340 = vmatpush1.bf16.msra.mxu0 0
    %341 = vmatprep.subr.bf16.mxu0 0
    %342 = vmatpush1.bf16.msra.mxu0 0
    %343 = vmatprep.subr.bf16.mxu0 0
    %344 = vmatpush1.bf16.msra.mxu0 0
    %345 = vmatprep.subr.bf16.mxu0 0
    %346 = vmatpush1.bf16.msra.mxu0 0
    %347 = vmatprep.subr.bf16.mxu0 0
    %348 = vmatpush1.bf16.msra.mxu0 0
    %349 = vmatprep.subr.bf16.mxu0 0
    %350 = vmatpush1.bf16.msra.mxu0 0
    %351 = vmatprep.subr.bf16.mxu0 0
    %352 = vmatpush1.bf16.msra.mxu0 0
    %353 = vmatprep.subr.bf16.mxu0 0
    %354 = vmatpush1.bf16.msra.mxu0 0
    %355 = vmatprep.mubr.bf16.mxu0 0
    %356 = vmatmul.mubr.bf16.gmra.mrb[0].mxu0 %v321
    %v357 = vpop.f32.mrb[0].mxu0
    %v358 = vadd.f32 0.0, %v357
    %v359 = vpop.f32.mrb[0].mxu0
    %v360 = vpop.f32.mrb[0].mxu0
    %v361 = vpop.f32.mrb[0].mxu0
    %362 = vdwg.mxu0
    %v363 = vpack.c.bf16 %v306, %v306
    %365 = vrot.lane.b32.xlu0 %v363, 32
    %v366 = vpop.permute.xlu0 %365
    %v371 = vunpack.c.l.b16 %v196
    %v372 = vunpack.c.l.b16 %v197
    %v373 = vunpack.c.l.b16 %v198
    %v374 = vunpack.c.l.b16 %v199
    %v375 = vpack.c.b16 %v372, %v371
    %v376 = vpack.c.b16 %v374, %v373
    %v380 = vsel %vm214, %v366, 0
    %382 = vmatprep.subr.bf16.mxu0 0
    %383 = vmatpush1.bf16.msra.mxu0 %v375
    %384 = vmatprep.subr.bf16.mxu0 0
    %385 = vmatpush1.bf16.msra.mxu0 %v376
    %386 = vmatprep.subr.bf16.mxu0 0
    %387 = vmatpush1.bf16.msra.mxu0 0
    %388 = vmatprep.subr.bf16.mxu0 0
    %389 = vmatpush1.bf16.msra.mxu0 0
    %390 = vmatprep.subr.bf16.mxu0 0
    %391 = vmatpush1.bf16.msra.mxu0 0
    %392 = vmatprep.subr.bf16.mxu0 0
    %393 = vmatpush1.bf16.msra.mxu0 0
    %394 = vmatprep.subr.bf16.mxu0 0
    %395 = vmatpush1.bf16.msra.mxu0 0
    %396 = vmatprep.subr.bf16.mxu0 0
    %397 = vmatpush1.bf16.msra.mxu0 0
    %398 = vmatprep.subr.bf16.mxu0 0
    %399 = vmatpush1.bf16.msra.mxu0 0
    %400 = vmatprep.subr.bf16.mxu0 0
    %401 = vmatpush1.bf16.msra.mxu0 0
    %402 = vmatprep.subr.bf16.mxu0 0
    %403 = vmatpush1.bf16.msra.mxu0 0
    %404 = vmatprep.subr.bf16.mxu0 0
    %405 = vmatpush1.bf16.msra.mxu0 0
    %406 = vmatprep.subr.bf16.mxu0 0
    %407 = vmatpush1.bf16.msra.mxu0 0
    %408 = vmatprep.subr.bf16.mxu0 0
    %409 = vmatpush1.bf16.msra.mxu0 0
    %410 = vmatprep.subr.bf16.mxu0 0
    %411 = vmatpush1.bf16.msra.mxu0 0
    %412 = vmatprep.subr.bf16.mxu0 0
    %413 = vmatpush1.bf16.msra.mxu0 0
    %414 = vmatprep.mubr.bf16.mxu0 0
    %415 = vmatmul.mubr.bf16.gmra.mrb[0].mxu0 %v380
    %v416 = vpop.f32.mrb[0].mxu0
    %v417 = vadd.f32 %v358, %v416
    %v418 = vpop.f32.mrb[0].mxu0
    %v419 = vpop.f32.mrb[0].mxu0
    %v420 = vpop.f32.mrb[0].mxu0
    %421 = vdwg.mxu0
    %v422 = vadd.f32 %v417, %v201
    %v423 = vxor.u32 %v422, 2147483648
    %v424 = vmul.f32 %v423, 1.442695
    %v425 = vpow.pop %v424
    %v426 = vadd.f32 %v425, 1.0
    %v427 = vrcp.pop %v426
    %v428 = vmul.f32 1.0, %v427
    %v429 = vmul.f32 %v428, 2.0
    %v430 = vsub.f32 %v429, 1.0
    %v432 = vlaneseq
    %v433 = vshrl.u32 %v432, 7
    %v434 = vsub.s32 0, %v433
    %v435 = vrot.slane %v213, %v434
    %436 = vrot.lane.b32.xlu0 %v435, 32
    %v437 = vpop.permute.xlu0 %436
    %v439 = vmul.f32 %v428, %v437
    %441 = vrot.lane.b32.xlu0 %v430, 64
    %v442 = vpop.permute.xlu0 %441
    %v444 = vmul.f32 %v428, %v442
    %446 = vrot.lane.b32.xlu0 %v444, 32
    %v447 = vpop.permute.xlu0 %446
    %v449 = vadd.f32 %v439, %v447
    %v450 = vtanh.pop %v449
    %452 = vrot.lane.b32.xlu0 %v450, 64
    %v453 = vpop.permute.xlu0 %452
    %v455 = vmul.f32 %v428, %v453
    %457 = vrot.lane.b32.xlu0 %v455, 32
    %v458 = vpop.permute.xlu0 %457
    %vm460 = vcmask 253952
    %461 = vst.msk [vmem:[#allocation3] sm:$0x1] %vm460, %v458
    %462 = vmatprep.subr.bf16.mxu0 0
    %463 = vmatpush1.bf16.msra.mxu0 %v225
    %464 = vmatprep.subr.bf16.mxu0 0
    %465 = vmatpush1.bf16.msra.mxu0 %v226
    %466 = vmatprep.subr.bf16.mxu0 0
    %467 = vmatpush1.bf16.msra.mxu0 0
    %468 = vmatprep.subr.bf16.mxu0 0
    %469 = vmatpush1.bf16.msra.mxu0 0
    %470 = vmatprep.subr.bf16.mxu0 0
    %471 = vmatpush1.bf16.msra.mxu0 0
    %472 = vmatprep.subr.bf16.mxu0 0
    %473 = vmatpush1.bf16.msra.mxu0 0
    %474 = vmatprep.subr.bf16.mxu0 0
    %475 = vmatpush1.bf16.msra.mxu0 0
    %476 = vmatprep.subr.bf16.mxu0 0
    %477 = vmatpush1.bf16.msra.mxu0 0
    %478 = vmatprep.subr.bf16.mxu0 0
    %479 = vmatpush1.bf16.msra.mxu0 0
    %480 = vmatprep.subr.bf16.mxu0 0
    %481 = vmatpush1.bf16.msra.mxu0 0
    %482 = vmatprep.subr.bf16.mxu0 0
    %483 = vmatpush1.bf16.msra.mxu0 0
    %484 = vmatprep.subr.bf16.mxu0 0
    %485 = vmatpush1.bf16.msra.mxu0 0
    %486 = vmatprep.subr.bf16.mxu0 0
    %487 = vmatpush1.bf16.msra.mxu0 0
    %488 = vmatprep.subr.bf16.mxu0 0
    %489 = vmatpush1.bf16.msra.mxu0 0
    %490 = vmatprep.subr.bf16.mxu0 0
    %491 = vmatpush1.bf16.msra.mxu0 0
    %492 = vmatprep.subr.bf16.mxu0 0
    %493 = vmatpush1.bf16.msra.mxu0 0
    %494 = vmatprep.mubr.bf16.mxu0 0
    %495 = vmatmul.mubr.bf16.gmra.mrb[0].mxu0 %v380
    %v496 = vpop.f32.mrb[0].mxu0
    %v497 = vadd.f32 0.0, %v496
    %v498 = vpop.f32.mrb[0].mxu0
    %v499 = vpop.f32.mrb[0].mxu0
    %v500 = vpop.f32.mrb[0].mxu0
    %501 = vdwg.mxu0
    %v502 = vld [vmem:[#allocation2 + $0x1] sm:$0x1]
    %v503 = vadd.f32 %v502, %v497
    %v504 = vxor.u32 %v503, 2147483648
    %v505 = vmul.f32 %v504, 1.442695
    %v506 = vpow.pop %v505
    %v507 = vadd.f32 %v506, 1.0
    %v508 = vrcp.pop %v507
    %v509 = vmul.f32 1.0, %v508
    %v510 = vmul.f32 %v509, 2.0
    %v511 = vsub.f32 %v510, 1.0
    %v512 = vmul.f32 %v509, %v300
    %514 = vrot.lane.b32.xlu0 %v511, 64
    %v515 = vpop.permute.xlu0 %514
    %v517 = vmul.f32 %v509, %v515
    %519 = vrot.lane.b32.xlu0 %v517, 32
    %v520 = vpop.permute.xlu0 %519
    %v522 = vadd.f32 %v512, %v520
    %v523 = vtanh.pop %v522
    %525 = vrot.lane.b32.xlu0 %v523, 64
    %v526 = vpop.permute.xlu0 %525
    %v528 = vmul.f32 %v509, %v526
    %v529 = vpack.c.bf16 %v455, %v455
    %531 = vrot.lane.b32.xlu0 %v529, 32
    %v532 = vpop.permute.xlu0 %531
    %v534 = vsel %vm214, %v532, 0
    %536 = vmatprep.subr.bf16.mxu0 0
    %537 = vmatpush1.bf16.msra.mxu0 %v316
    %538 = vmatprep.subr.bf16.mxu0 0
    %539 = vmatpush1.bf16.msra.mxu0 %v317
    %540 = vmatprep.subr.bf16.mxu0 0
    %541 = vmatpush1.bf16.msra.mxu0 0
    %542 = vmatprep.subr.bf16.mxu0 0
    %543 = vmatpush1.bf16.msra.mxu0 0
    %544 = vmatprep.subr.bf16.mxu0 0
    %545 = vmatpush1.bf16.msra.mxu0 0
    %546 = vmatprep.subr.bf16.mxu0 0
    %547 = vmatpush1.bf16.msra.mxu0 0
    %548 = vmatprep.subr.bf16.mxu0 0
    %549 = vmatpush1.bf16.msra.mxu0 0
    %550 = vmatprep.subr.bf16.mxu0 0
    %551 = vmatpush1.bf16.msra.mxu0 0
    %552 = vmatprep.subr.bf16.mxu0 0
    %553 = vmatpush1.bf16.msra.mxu0 0
    %554 = vmatprep.subr.bf16.mxu0 0
    %555 = vmatpush1.bf16.msra.mxu0 0
    %556 = vmatprep.subr.bf16.mxu0 0
    %557 = vmatpush1.bf16.msra.mxu0 0
    %558 = vmatprep.subr.bf16.mxu0 0
    %559 = vmatpush1.bf16.msra.mxu0 0
    %560 = vmatprep.subr.bf16.mxu0 0
    %561 = vmatpush1.bf16.msra.mxu0 0
    %562 = vmatprep.subr.bf16.mxu0 0
    %563 = vmatpush1.bf16.msra.mxu0 0
    %564 = vmatprep.subr.bf16.mxu0 0
    %565 = vmatpush1.bf16.msra.mxu0 0
    %566 = vmatprep.subr.bf16.mxu0 0
    %567 = vmatpush1.bf16.msra.mxu0 0
    %568 = vmatprep.mubr.bf16.mxu0 0
    %569 = vmatmul.mubr.bf16.gmra.mrb[0].mxu0 %v534
    %v570 = vpop.f32.mrb[0].mxu0
    %v571 = vadd.f32 0.0, %v570
    %v572 = vpop.f32.mrb[0].mxu0
    %v573 = vpop.f32.mrb[0].mxu0
    %v574 = vpop.f32.mrb[0].mxu0
    %575 = vdwg.mxu0
    %v576 = vpack.c.bf16 %v528, %v528
    %578 = vrot.lane.b32.xlu0 %v576, 32
    %v579 = vpop.permute.xlu0 %578
    %v581 = vsel %vm214, %v579, 0
    %583 = vmatprep.subr.bf16.mxu0 0
    %584 = vmatpush1.bf16.msra.mxu0 %v375
    %585 = vmatprep.subr.bf16.mxu0 0
    %586 = vmatpush1.bf16.msra.mxu0 %v376
    %587 = vmatprep.subr.bf16.mxu0 0
    %588 = vmatpush1.bf16.msra.mxu0 0
    %589 = vmatprep.subr.bf16.mxu0 0
    %590 = vmatpush1.bf16.msra.mxu0 0
    %591 = vmatprep.subr.bf16.mxu0 0
    %592 = vmatpush1.bf16.msra.mxu0 0
    %593 = vmatprep.subr.bf16.mxu0 0
    %594 = vmatpush1.bf16.msra.mxu0 0
    %595 = vmatprep.subr.bf16.mxu0 0
    %596 = vmatpush1.bf16.msra.mxu0 0
    %597 = vmatprep.subr.bf16.mxu0 0
    %598 = vmatpush1.bf16.msra.mxu0 0
    %599 = vmatprep.subr.bf16.mxu0 0
    %600 = vmatpush1.bf16.msra.mxu0 0
    %601 = vmatprep.subr.bf16.mxu0 0
    %602 = vmatpush1.bf16.msra.mxu0 0
    %603 = vmatprep.subr.bf16.mxu0 0
    %604 = vmatpush1.bf16.msra.mxu0 0
    %605 = vmatprep.subr.bf16.mxu0 0
    %606 = vmatpush1.bf16.msra.mxu0 0
    %607 = vmatprep.subr.bf16.mxu0 0
    %608 = vmatpush1.bf16.msra.mxu0 0
    %609 = vmatprep.subr.bf16.mxu0 0
    %610 = vmatpush1.bf16.msra.mxu0 0
    %611 = vmatprep.subr.bf16.mxu0 0
    %612 = vmatpush1.bf16.msra.mxu0 0
    %613 = vmatprep.subr.bf16.mxu0 0
    %614 = vmatpush1.bf16.msra.mxu0 0
    %615 = vmatprep.mubr.bf16.mxu0 0
    %616 = vmatmul.mubr.bf16.gmra.mrb[0].mxu0 %v581
    %v617 = vpop.f32.mrb[0].mxu0
    %v618 = vadd.f32 %v571, %v617
    %v619 = vpop.f32.mrb[0].mxu0
    %v620 = vpop.f32.mrb[0].mxu0
    %v621 = vpop.f32.mrb[0].mxu0
    %622 = vdwg.mxu0
    %v623 = vadd.f32 %v618, %v201
    %v624 = vxor.u32 %v623, 2147483648
    %v625 = vmul.f32 %v624, 1.442695
    %v626 = vpow.pop %v625
    %v627 = vadd.f32 %v626, 1.0
    %v628 = vrcp.pop %v627
    %v629 = vmul.f32 1.0, %v628
    %v630 = vmul.f32 %v629, 2.0
    %v631 = vsub.f32 %v630, 1.0
    %v632 = vmul.f32 %v629, %v449
    %634 = vrot.lane.b32.xlu0 %v631, 64
    %v635 = vpop.permute.xlu0 %634
    %v637 = vmul.f32 %v629, %v635
    %639 = vrot.lane.b32.xlu0 %v637, 32
    %v640 = vpop.permute.xlu0 %639
    %v642 = vadd.f32 %v632, %v640
    %v643 = vtanh.pop %v642
    %645 = vrot.lane.b32.xlu0 %v643, 64
    %v646 = vpop.permute.xlu0 %645
    %v648 = vmul.f32 %v629, %v646
    %650 = vrot.lane.b32.xlu0 %v648, 32
    %v651 = vpop.permute.xlu0 %650
    %653 = vst.msk [vmem:[#allocation3 + $0x1] sm:$0x1] %vm460, %v651
    %654 = vmatprep.subr.bf16.mxu0 0
    %655 = vmatpush1.bf16.msra.mxu0 %v225
    %656 = vmatprep.subr.bf16.mxu0 0
    %657 = vmatpush1.bf16.msra.mxu0 %v226
    %658 = vmatprep.subr.bf16.mxu0 0
    %659 = vmatpush1.bf16.msra.mxu0 0
    %660 = vmatprep.subr.bf16.mxu0 0
    %661 = vmatpush1.bf16.msra.mxu0 0
    %662 = vmatprep.subr.bf16.mxu0 0
    %663 = vmatpush1.bf16.msra.mxu0 0
    %664 = vmatprep.subr.bf16.mxu0 0
    %665 = vmatpush1.bf16.msra.mxu0 0
    %666 = vmatprep.subr.bf16.mxu0 0
    %667 = vmatpush1.bf16.msra.mxu0 0
    %668 = vmatprep.subr.bf16.mxu0 0
    %669 = vmatpush1.bf16.msra.mxu0 0
    %670 = vmatprep.subr.bf16.mxu0 0
    %671 = vmatpush1.bf16.msra.mxu0 0
    %672 = vmatprep.subr.bf16.mxu0 0
    %673 = vmatpush1.bf16.msra.mxu0 0
    %674 = vmatprep.subr.bf16.mxu0 0
    %675 = vmatpush1.bf16.msra.mxu0 0
    %676 = vmatprep.subr.bf16.mxu0 0
    %677 = vmatpush1.bf16.msra.mxu0 0
    %678 = vmatprep.subr.bf16.mxu0 0
    %679 = vmatpush1.bf16.msra.mxu0 0
    %680 = vmatprep.subr.bf16.mxu0 0
    %681 = vmatpush1.bf16.msra.mxu0 0
    %682 = vmatprep.subr.bf16.mxu0 0
    %683 = vmatpush1.bf16.msra.mxu0 0
    %684 = vmatprep.subr.bf16.mxu0 0
    %685 = vmatpush1.bf16.msra.mxu0 0
    %686 = vmatprep.mubr.bf16.mxu0 0
    %687 = vmatmul.mubr.bf16.gmra.mrb[0].mxu0 %v581
    %v688 = vpop.f32.mrb[0].mxu0
    %v689 = vadd.f32 0.0, %v688
    %v690 = vpop.f32.mrb[0].mxu0
    %v691 = vpop.f32.mrb[0].mxu0
    %v692 = vpop.f32.mrb[0].mxu0
    %693 = vdwg.mxu0
    %v694 = vld [vmem:[#allocation2 + $0x2] sm:$0x1]
    %v695 = vadd.f32 %v694, %v689
    %v696 = vxor.u32 %v695, 2147483648
    %v697 = vmul.f32 %v696, 1.442695
    %v698 = vpow.pop %v697
    %v699 = vadd.f32 %v698, 1.0
    %v700 = vrcp.pop %v699
    %v701 = vmul.f32 1.0, %v700
    %v702 = vmul.f32 %v701, 2.0
    %v703 = vsub.f32 %v702, 1.0
    %v704 = vmul.f32 %v701, %v522
    %706 = vrot.lane.b32.xlu0 %v703, 64
    %v707 = vpop.permute.xlu0 %706
    %v709 = vmul.f32 %v701, %v707
    %711 = vrot.lane.b32.xlu0 %v709, 32
    %v712 = vpop.permute.xlu0 %711
    %v714 = vadd.f32 %v704, %v712
    %v715 = vtanh.pop %v714
    %717 = vrot.lane.b32.xlu0 %v715, 64
    %v718 = vpop.permute.xlu0 %717
    %v720 = vmul.f32 %v701, %v718
    %v721 = vpack.c.bf16 %v648, %v648
    %723 = vrot.lane.b32.xlu0 %v721, 32
    %v724 = vpop.permute.xlu0 %723
    %v726 = vsel %vm214, %v724, 0
    %728 = vmatprep.subr.bf16.mxu0 0
    %729 = vmatpush1.bf16.msra.mxu0 %v316
    %730 = vmatprep.subr.bf16.mxu0 0
    %731 = vmatpush1.bf16.msra.mxu0 %v317
    %732 = vmatprep.subr.bf16.mxu0 0
    %733 = vmatpush1.bf16.msra.mxu0 0
    %734 = vmatprep.subr.bf16.mxu0 0
    %735 = vmatpush1.bf16.msra.mxu0 0
    %736 = vmatprep.subr.bf16.mxu0 0
    %737 = vmatpush1.bf16.msra.mxu0 0
    %738 = vmatprep.subr.bf16.mxu0 0
    %739 = vmatpush1.bf16.msra.mxu0 0
    %740 = vmatprep.subr.bf16.mxu0 0
    %741 = vmatpush1.bf16.msra.mxu0 0
    %742 = vmatprep.subr.bf16.mxu0 0
    %743 = vmatpush1.bf16.msra.mxu0 0
    %744 = vmatprep.subr.bf16.mxu0 0
    %745 = vmatpush1.bf16.msra.mxu0 0
    %746 = vmatprep.subr.bf16.mxu0 0
    %747 = vmatpush1.bf16.msra.mxu0 0
    %748 = vmatprep.subr.bf16.mxu0 0
    %749 = vmatpush1.bf16.msra.mxu0 0
    %750 = vmatprep.subr.bf16.mxu0 0
    %751 = vmatpush1.bf16.msra.mxu0 0
    %752 = vmatprep.subr.bf16.mxu0 0
    %753 = vmatpush1.bf16.msra.mxu0 0
    %754 = vmatprep.subr.bf16.mxu0 0
    %755 = vmatpush1.bf16.msra.mxu0 0
    %756 = vmatprep.subr.bf16.mxu0 0
    %757 = vmatpush1.bf16.msra.mxu0 0
    %758 = vmatprep.subr.bf16.mxu0 0
    %759 = vmatpush1.bf16.msra.mxu0 0
    %760 = vmatprep.mubr.bf16.mxu0 0
    %761 = vmatmul.mubr.bf16.gmra.mrb[0].mxu0 %v726
    %v762 = vpop.f32.mrb[0].mxu0
    %v763 = vadd.f32 0.0, %v762
    %v764 = vpop.f32.mrb[0].mxu0
    %v765 = vpop.f32.mrb[0].mxu0
    %v766 = vpop.f32.mrb[0].mxu0
    %767 = vdwg.mxu0
    %v768 = vpack.c.bf16 %v720, %v720
    %770 = vrot.lane.b32.xlu0 %v768, 32
    %v771 = vpop.permute.xlu0 %770
    %v773 = vsel %vm214, %v771, 0
    %775 = vmatprep.subr.bf16.mxu0 0
    %776 = vmatpush1.bf16.msra.mxu0 %v375
    %777 = vmatprep.subr.bf16.mxu0 0
    %778 = vmatpush1.bf16.msra.mxu0 %v376
    %779 = vmatprep.subr.bf16.mxu0 0
    %780 = vmatpush1.bf16.msra.mxu0 0
    %781 = vmatprep.subr.bf16.mxu0 0
    %782 = vmatpush1.bf16.msra.mxu0 0
    %783 = vmatprep.subr.bf16.mxu0 0
    %784 = vmatpush1.bf16.msra.mxu0 0
    %785 = vmatprep.subr.bf16.mxu0 0
    %786 = vmatpush1.bf16.msra.mxu0 0
    %787 = vmatprep.subr.bf16.mxu0 0
    %788 = vmatpush1.bf16.msra.mxu0 0
    %789 = vmatprep.subr.bf16.mxu0 0
    %790 = vmatpush1.bf16.msra.mxu0 0
    %791 = vmatprep.subr.bf16.mxu0 0
    %792 = vmatpush1.bf16.msra.mxu0 0
    %793 = vmatprep.subr.bf16.mxu0 0
    %794 = vmatpush1.bf16.msra.mxu0 0
    %795 = vmatprep.subr.bf16.mxu0 0
    %796 = vmatpush1.bf16.msra.mxu0 0
    %797 = vmatprep.subr.bf16.mxu0 0
    %798 = vmatpush1.bf16.msra.mxu0 0
    %799 = vmatprep.subr.bf16.mxu0 0
    %800 = vmatpush1.bf16.msra.mxu0 0
    %801 = vmatprep.subr.bf16.mxu0 0
    %802 = vmatpush1.bf16.msra.mxu0 0
    %803 = vmatprep.subr.bf16.mxu0 0
    %804 = vmatpush1.bf16.msra.mxu0 0
    %805 = vmatprep.subr.bf16.mxu0 0
    %806 = vmatpush1.bf16.msra.mxu0 0
    %807 = vmatprep.mubr.bf16.mxu0 0
    %808 = vmatmul.mubr.bf16.gmra.mrb[0].mxu0 %v773
    %v809 = vpop.f32.mrb[0].mxu0
    %v810 = vadd.f32 %v763, %v809
    %v811 = vpop.f32.mrb[0].mxu0
    %v812 = vpop.f32.mrb[0].mxu0
    %v813 = vpop.f32.mrb[0].mxu0
    %814 = vdwg.mxu0
    %v815 = vadd.f32 %v810, %v201
    %v816 = vxor.u32 %v815, 2147483648
    %v817 = vmul.f32 %v816, 1.442695
    %v818 = vpow.pop %v817
    %v819 = vadd.f32 %v818, 1.0
    %v820 = vrcp.pop %v819
    %v821 = vmul.f32 1.0, %v820
    %v822 = vmul.f32 %v821, 2.0
    %v823 = vsub.f32 %v822, 1.0
    %v824 = vmul.f32 %v821, %v642
    %826 = vrot.lane.b32.xlu0 %v823, 64
    %v827 = vpop.permute.xlu0 %826
    %v829 = vmul.f32 %v821, %v827
    %831 = vrot.lane.b32.xlu0 %v829, 32
    %v832 = vpop.permute.xlu0 %831
    %v834 = vadd.f32 %v824, %v832
    %v835 = vtanh.pop %v834
    %837 = vrot.lane.b32.xlu0 %v835, 64
    %v838 = vpop.permute.xlu0 %837
    %v840 = vmul.f32 %v821, %v838
    %842 = vrot.lane.b32.xlu0 %v840, 32
    %v843 = vpop.permute.xlu0 %842
    %845 = vst.msk [vmem:[#allocation3 + $0x2] sm:$0x1] %vm460, %v843
    %846 = vmatprep.subr.bf16.mxu0 0
    %847 = vmatpush1.bf16.msra.mxu0 %v225
    %848 = vmatprep.subr.bf16.mxu0 0
    %849 = vmatpush1.bf16.msra.mxu0 %v226
    %850 = vmatprep.subr.bf16.mxu0 0
    %851 = vmatpush1.bf16.msra.mxu0 0
    %852 = vmatprep.subr.bf16.mxu0 0
    %853 = vmatpush1.bf16.msra.mxu0 0
    %854 = vmatprep.subr.bf16.mxu0 0
    %855 = vmatpush1.bf16.msra.mxu0 0
    %856 = vmatprep.subr.bf16.mxu0 0
    %857 = vmatpush1.bf16.msra.mxu0 0
    %858 = vmatprep.subr.bf16.mxu0 0
    %859 = vmatpush1.bf16.msra.mxu0 0
    %860 = vmatprep.subr.bf16.mxu0 0
    %861 = vmatpush1.bf16.msra.mxu0 0
    %862 = vmatprep.subr.bf16.mxu0 0
    %863 = vmatpush1.bf16.msra.mxu0 0
    %864 = vmatprep.subr.bf16.mxu0 0
    %865 = vmatpush1.bf16.msra.mxu0 0
    %866 = vmatprep.subr.bf16.mxu0 0
    %867 = vmatpush1.bf16.msra.mxu0 0
    %868 = vmatprep.subr.bf16.mxu0 0
    %869 = vmatpush1.bf16.msra.mxu0 0
    %870 = vmatprep.subr.bf16.mxu0 0
    %871 = vmatpush1.bf16.msra.mxu0 0
    %872 = vmatprep.subr.bf16.mxu0 0
    %873 = vmatpush1.bf16.msra.mxu0 0
    %874 = vmatprep.subr.bf16.mxu0 0
    %875 = vmatpush1.bf16.msra.mxu0 0
    %876 = vmatprep.subr.bf16.mxu0 0
    %877 = vmatpush1.bf16.msra.mxu0 0
    %878 = vmatprep.mubr.bf16.mxu0 0
    %879 = vmatmul.mubr.bf16.gmra.mrb[0].mxu0 %v773
    %v880 = vpop.f32.mrb[0].mxu0
    %v881 = vadd.f32 0.0, %v880
    %v882 = vpop.f32.mrb[0].mxu0
    %v883 = vpop.f32.mrb[0].mxu0
    %v884 = vpop.f32.mrb[0].mxu0
    %885 = vdwg.mxu0
    %v886 = vld [vmem:[#allocation2 + $0x3] sm:$0x1]
    %v887 = vadd.f32 %v886, %v881
    %v888 = vxor.u32 %v887, 2147483648
    %v889 = vmul.f32 %v888, 1.442695
    %v890 = vpow.pop %v889
    %v891 = vadd.f32 %v890, 1.0
    %v892 = vrcp.pop %v891
    %v893 = vmul.f32 1.0, %v892
    %v894 = vmul.f32 %v893, 2.0
    %v895 = vsub.f32 %v894, 1.0
    %v896 = vmul.f32 %v893, %v714
    %898 = vrot.lane.b32.xlu0 %v895, 64
    %v899 = vpop.permute.xlu0 %898
    %v901 = vmul.f32 %v893, %v899
    %903 = vrot.lane.b32.xlu0 %v901, 32
    %v904 = vpop.permute.xlu0 %903
    %v906 = vadd.f32 %v896, %v904
    %v907 = vtanh.pop %v906
    %909 = vrot.lane.b32.xlu0 %v907, 64
    %v910 = vpop.permute.xlu0 %909
    %v912 = vmul.f32 %v893, %v910
    %v913 = vpack.c.bf16 %v840, %v840
    %915 = vrot.lane.b32.xlu0 %v913, 32
    %v916 = vpop.permute.xlu0 %915
    %v918 = vsel %vm214, %v916, 0
    %920 = vmatprep.subr.bf16.mxu0 0
    %921 = vmatpush1.bf16.msra.mxu0 %v316
    %922 = vmatprep.subr.bf16.mxu0 0
    %923 = vmatpush1.bf16.msra.mxu0 %v317
    %924 = vmatprep.subr.bf16.mxu0 0
    %925 = vmatpush1.bf16.msra.mxu0 0
    %926 = vmatprep.subr.bf16.mxu0 0
    %927 = vmatpush1.bf16.msra.mxu0 0
    %928 = vmatprep.subr.bf16.mxu0 0
    %929 = vmatpush1.bf16.msra.mxu0 0
    %930 = vmatprep.subr.bf16.mxu0 0
    %931 = vmatpush1.bf16.msra.mxu0 0
    %932 = vmatprep.subr.bf16.mxu0 0
    %933 = vmatpush1.bf16.msra.mxu0 0
    %934 = vmatprep.subr.bf16.mxu0 0
    %935 = vmatpush1.bf16.msra.mxu0 0
    %936 = vmatprep.subr.bf16.mxu0 0
    %937 = vmatpush1.bf16.msra.mxu0 0
    %938 = vmatprep.subr.bf16.mxu0 0
    %939 = vmatpush1.bf16.msra.mxu0 0
    %940 = vmatprep.subr.bf16.mxu0 0
    %941 = vmatpush1.bf16.msra.mxu0 0
    %942 = vmatprep.subr.bf16.mxu0 0
    %943 = vmatpush1.bf16.msra.mxu0 0
    %944 = vmatprep.subr.bf16.mxu0 0
    %945 = vmatpush1.bf16.msra.mxu0 0
    %946 = vmatprep.subr.bf16.mxu0 0
    %947 = vmatpush1.bf16.msra.mxu0 0
    %948 = vmatprep.subr.bf16.mxu0 0
    %949 = vmatpush1.bf16.msra.mxu0 0
    %950 = vmatprep.subr.bf16.mxu0 0
    %951 = vmatpush1.bf16.msra.mxu0 0
    %952 = vmatprep.mubr.bf16.mxu0 0
    %953 = vmatmul.mubr.bf16.gmra.mrb[0].mxu0 %v918
    %v954 = vpop.f32.mrb[0].mxu0
    %v955 = vadd.f32 0.0, %v954
    %v956 = vpop.f32.mrb[0].mxu0
    %v957 = vpop.f32.mrb[0].mxu0
    %v958 = vpop.f32.mrb[0].mxu0
    %959 = vdwg.mxu0
    %v960 = vpack.c.bf16 %v912, %v912
    %962 = vrot.lane.b32.xlu0 %v960, 32
    %v963 = vpop.permute.xlu0 %962
    %v965 = vsel %vm214, %v963, 0
    %967 = vmatprep.subr.bf16.mxu0 0
    %968 = vmatpush1.bf16.msra.mxu0 %v375
    %969 = vmatprep.subr.bf16.mxu0 0
    %970 = vmatpush1.bf16.msra.mxu0 %v376
    %971 = vmatprep.subr.bf16.mxu0 0
    %972 = vmatpush1.bf16.msra.mxu0 0
    %973 = vmatprep.subr.bf16.mxu0 0
    %974 = vmatpush1.bf16.msra.mxu0 0
    %975 = vmatprep.subr.bf16.mxu0 0
    %976 = vmatpush1.bf16.msra.mxu0 0
    %977 = vmatprep.subr.bf16.mxu0 0
    %978 = vmatpush1.bf16.msra.mxu0 0
    %979 = vmatprep.subr.bf16.mxu0 0
    %980 = vmatpush1.bf16.msra.mxu0 0
    %981 = vmatprep.subr.bf16.mxu0 0
    %982 = vmatpush1.bf16.msra.mxu0 0
    %983 = vmatprep.subr.bf16.mxu0 0
    %984 = vmatpush1.bf16.msra.mxu0 0
    %985 = vmatprep.subr.bf16.mxu0 0
    %986 = vmatpush1.bf16.msra.mxu0 0
    %987 = vmatprep.subr.bf16.mxu0 0
    %988 = vmatpush1.bf16.msra.mxu0 0
    %989 = vmatprep.subr.bf16.mxu0 0
    %990 = vmatpush1.bf16.msra.mxu0 0
    %991 = vmatprep.subr.bf16.mxu0 0
    %992 = vmatpush1.bf16.msra.mxu0 0
    %993 = vmatprep.subr.bf16.mxu0 0
    %994 = vmatpush1.bf16.msra.mxu0 0
    %995 = vmatprep.subr.bf16.mxu0 0
    %996 = vmatpush1.bf16.msra.mxu0 0
    %997 = vmatprep.subr.bf16.mxu0 0
    %998 = vmatpush1.bf16.msra.mxu0 0
    %999 = vmatprep.mubr.bf16.mxu0 0
    %1000 = vmatmul.mubr.bf16.gmra.mrb[0].mxu0 %v965
    %v1001 = vpop.f32.mrb[0].mxu0
    %v1002 = vadd.f32 %v955, %v1001
    %v1003 = vpop.f32.mrb[0].mxu0
    %v1004 = vpop.f32.mrb[0].mxu0
    %v1005 = vpop.f32.mrb[0].mxu0
    %1006 = vdwg.mxu0
    %v1007 = vadd.f32 %v1002, %v201
    %v1008 = vxor.u32 %v1007, 2147483648
    %v1009 = vmul.f32 %v1008, 1.442695
    %v1010 = vpow.pop %v1009
    %v1011 = vadd.f32 %v1010, 1.0
    %v1012 = vrcp.pop %v1011
    %v1013 = vmul.f32 1.0, %v1012
    %v1014 = vmul.f32 %v1013, 2.0
    %v1015 = vsub.f32 %v1014, 1.0
    %v1016 = vmul.f32 %v1013, %v834
    %1018 = vrot.lane.b32.xlu0 %v1015, 64
    %v1019 = vpop.permute.xlu0 %1018
    %v1021 = vmul.f32 %v1013, %v1019
    %1023 = vrot.lane.b32.xlu0 %v1021, 32
    %v1024 = vpop.permute.xlu0 %1023
    %v1026 = vadd.f32 %v1016, %v1024
    %v1027 = vtanh.pop %v1026
    %1029 = vrot.lane.b32.xlu0 %v1027, 64
    %v1030 = vpop.permute.xlu0 %1029
    %v1032 = vmul.f32 %v1013, %v1030
    %1034 = vrot.lane.b32.xlu0 %v1032, 32
    %v1035 = vpop.permute.xlu0 %1034
    %1037 = vst.msk [vmem:[#allocation3 + $0x3] sm:$0x1] %vm460, %v1035
    %1038 = vmatprep.subr.bf16.mxu0 0
    %1039 = vmatpush1.bf16.msra.mxu0 %v225
    %1040 = vmatprep.subr.bf16.mxu0 0
    %1041 = vmatpush1.bf16.msra.mxu0 %v226
    %1042 = vmatprep.subr.bf16.mxu0 0
    %1043 = vmatpush1.bf16.msra.mxu0 0
    %1044 = vmatprep.subr.bf16.mxu0 0
    %1045 = vmatpush1.bf16.msra.mxu0 0
    %1046 = vmatprep.subr.bf16.mxu0 0
    %1047 = vmatpush1.bf16.msra.mxu0 0
    %1048 = vmatprep.subr.bf16.mxu0 0
    %1049 = vmatpush1.bf16.msra.mxu0 0
    %1050 = vmatprep.subr.bf16.mxu0 0
    %1051 = vmatpush1.bf16.msra.mxu0 0
    %1052 = vmatprep.subr.bf16.mxu0 0
    %1053 = vmatpush1.bf16.msra.mxu0 0
    %1054 = vmatprep.subr.bf16.mxu0 0
    %1055 = vmatpush1.bf16.msra.mxu0 0
    %1056 = vmatprep.subr.bf16.mxu0 0
    %1057 = vmatpush1.bf16.msra.mxu0 0
    %1058 = vmatprep.subr.bf16.mxu0 0
    %1059 = vmatpush1.bf16.msra.mxu0 0
    %1060 = vmatprep.subr.bf16.mxu0 0
    %1061 = vmatpush1.bf16.msra.mxu0 0
    %1062 = vmatprep.subr.bf16.mxu0 0
    %1063 = vmatpush1.bf16.msra.mxu0 0
    %1064 = vmatprep.subr.bf16.mxu0 0
    %1065 = vmatpush1.bf16.msra.mxu0 0
    %1066 = vmatprep.subr.bf16.mxu0 0
    %1067 = vmatpush1.bf16.msra.mxu0 0
    %1068 = vmatprep.subr.bf16.mxu0 0
    %1069 = vmatpush1.bf16.msra.mxu0 0
    %1070 = vmatprep.mubr.bf16.mxu0 0
    %1071 = vmatmul.mubr.bf16.gmra.mrb[0].mxu0 %v965
    %v1072 = vpop.f32.mrb[0].mxu0
    %v1073 = vadd.f32 0.0, %v1072
    %v1074 = vpop.f32.mrb[0].mxu0
    %v1075 = vpop.f32.mrb[0].mxu0
    %v1076 = vpop.f32.mrb[0].mxu0
    %1077 = vdwg.mxu0
    %v1078 = vld [vmem:[#allocation2 + $0x4] sm:$0x1]
    %v1079 = vadd.f32 %v1078, %v1073
    %v1080 = vxor.u32 %v1079, 2147483648
    %v1081 = vmul.f32 %v1080, 1.442695
    %v1082 = vpow.pop %v1081
    %v1083 = vadd.f32 %v1082, 1.0
    %v1084 = vrcp.pop %v1083
    %v1085 = vmul.f32 1.0, %v1084
    %v1086 = vmul.f32 %v1085, 2.0
    %v1087 = vsub.f32 %v1086, 1.0
    %v1088 = vmul.f32 %v1085, %v906
    %1090 = vrot.lane.b32.xlu0 %v1087, 64
    %v1091 = vpop.permute.xlu0 %1090
    %v1093 = vmul.f32 %v1085, %v1091
    %1095 = vrot.lane.b32.xlu0 %v1093, 32
    %v1096 = vpop.permute.xlu0 %1095
    %v1098 = vadd.f32 %v1088, %v1096
    %v1099 = vtanh.pop %v1098
    %1101 = vrot.lane.b32.xlu0 %v1099, 64
    %v1102 = vpop.permute.xlu0 %1101
    %v1104 = vmul.f32 %v1085, %v1102
    %v1105 = vpack.c.bf16 %v1032, %v1032
    %1107 = vrot.lane.b32.xlu0 %v1105, 32
    %v1108 = vpop.permute.xlu0 %1107
    %v1110 = vsel %vm214, %v1108, 0
    %1112 = vmatprep.subr.bf16.mxu0 0
    %1113 = vmatpush1.bf16.msra.mxu0 %v316
    %1114 = vmatprep.subr.bf16.mxu0 0
    %1115 = vmatpush1.bf16.msra.mxu0 %v317
    %1116 = vmatprep.subr.bf16.mxu0 0
    %1117 = vmatpush1.bf16.msra.mxu0 0
    %1118 = vmatprep.subr.bf16.mxu0 0
    %1119 = vmatpush1.bf16.msra.mxu0 0
    %1120 = vmatprep.subr.bf16.mxu0 0
    %1121 = vmatpush1.bf16.msra.mxu0 0
    %1122 = vmatprep.subr.bf16.mxu0 0
    %1123 = vmatpush1.bf16.msra.mxu0 0
    %1124 = vmatprep.subr.bf16.mxu0 0
    %1125 = vmatpush1.bf16.msra.mxu0 0
    %1126 = vmatprep.subr.bf16.mxu0 0
    %1127 = vmatpush1.bf16.msra.mxu0 0
    %1128 = vmatprep.subr.bf16.mxu0 0
    %1129 = vmatpush1.bf16.msra.mxu0 0
    %1130 = vmatprep.subr.bf16.mxu0 0
    %1131 = vmatpush1.bf16.msra.mxu0 0
    %1132 = vmatprep.subr.bf16.mxu0 0
    %1133 = vmatpush1.bf16.msra.mxu0 0
    %1134 = vmatprep.subr.bf16.mxu0 0
    %1135 = vmatpush1.bf16.msra.mxu0 0
    %1136 = vmatprep.subr.bf16.mxu0 0
    %1137 = vmatpush1.bf16.msra.mxu0 0
    %1138 = vmatprep.subr.bf16.mxu0 0
    %1139 = vmatpush1.bf16.msra.mxu0 0
    %1140 = vmatprep.subr.bf16.mxu0 0
    %1141 = vmatpush1.bf16.msra.mxu0 0
    %1142 = vmatprep.subr.bf16.mxu0 0
    %1143 = vmatpush1.bf16.msra.mxu0 0
    %1144 = vmatprep.mubr.bf16.mxu0 0
    %1145 = vmatmul.mubr.bf16.gmra.mrb[0].mxu0 %v1110
    %v1146 = vpop.f32.mrb[0].mxu0
    %v1147 = vadd.f32 0.0, %v1146
    %v1148 = vpop.f32.mrb[0].mxu0
    %v1149 = vpop.f32.mrb[0].mxu0
    %v1150 = vpop.f32.mrb[0].mxu0
    %1151 = vdwg.mxu0
    %v1152 = vpack.c.bf16 %v1104, %v1104
    %1154 = vrot.lane.b32.xlu0 %v1152, 32
    %v1155 = vpop.permute.xlu0 %1154
    %v1157 = vsel %vm214, %v1155, 0
    %1159 = vmatprep.subr.bf16.mxu0 0
    %1160 = vmatpush1.bf16.msra.mxu0 %v375
    %1161 = vmatprep.subr.bf16.mxu0 0
    %1162 = vmatpush1.bf16.msra.mxu0 %v376
    %1163 = vmatprep.subr.bf16.mxu0 0
    %1164 = vmatpush1.bf16.msra.mxu0 0
    %1165 = vmatprep.subr.bf16.mxu0 0
    %1166 = vmatpush1.bf16.msra.mxu0 0
    %1167 = vmatprep.subr.bf16.mxu0 0
    %1168 = vmatpush1.bf16.msra.mxu0 0
    %1169 = vmatprep.subr.bf16.mxu0 0
    %1170 = vmatpush1.bf16.msra.mxu0 0
    %1171 = vmatprep.subr.bf16.mxu0 0
    %1172 = vmatpush1.bf16.msra.mxu0 0
    %1173 = vmatprep.subr.bf16.mxu0 0
    %1174 = vmatpush1.bf16.msra.mxu0 0
    %1175 = vmatprep.subr.bf16.mxu0 0
    %1176 = vmatpush1.bf16.msra.mxu0 0
    %1177 = vmatprep.subr.bf16.mxu0 0
    %1178 = vmatpush1.bf16.msra.mxu0 0
    %1179 = vmatprep.subr.bf16.mxu0 0
    %1180 = vmatpush1.bf16.msra.mxu0 0
    %1181 = vmatprep.subr.bf16.mxu0 0
    %1182 = vmatpush1.bf16.msra.mxu0 0
    %1183 = vmatprep.subr.bf16.mxu0 0
    %1184 = vmatpush1.bf16.msra.mxu0 0
    %1185 = vmatprep.subr.bf16.mxu0 0
    %1186 = vmatpush1.bf16.msra.mxu0 0
    %1187 = vmatprep.subr.bf16.mxu0 0
    %1188 = vmatpush1.bf16.msra.mxu0 0
    %1189 = vmatprep.subr.bf16.mxu0 0
    %1190 = vmatpush1.bf16.msra.mxu0 0
    %1191 = vmatprep.mubr.bf16.mxu0 0
    %1192 = vmatmul.mubr.bf16.gmra.mrb[0].mxu0 %v1157
    %v1193 = vpop.f32.mrb[0].mxu0
    %v1194 = vadd.f32 %v1147, %v1193
    %v1195 = vpop.f32.mrb[0].mxu0
    %v1196 = vpop.f32.mrb[0].mxu0
    %v1197 = vpop.f32.mrb[0].mxu0
    %1198 = vdwg.mxu0
    %v1199 = vadd.f32 %v1194, %v201
    %v1200 = vxor.u32 %v1199, 2147483648
    %v1201 = vmul.f32 %v1200, 1.442695
    %v1202 = vpow.pop %v1201
    %v1203 = vadd.f32 %v1202, 1.0
    %v1204 = vrcp.pop %v1203
    %v1205 = vmul.f32 1.0, %v1204
    %v1206 = vmul.f32 %v1205, 2.0
    %v1207 = vsub.f32 %v1206, 1.0
    %v1208 = vmul.f32 %v1205, %v1026
    %1210 = vrot.lane.b32.xlu0 %v1207, 64
    %v1211 = vpop.permute.xlu0 %1210
    %v1213 = vmul.f32 %v1205, %v1211
    %1215 = vrot.lane.b32.xlu0 %v1213, 32
    %v1216 = vpop.permute.xlu0 %1215
    %v1218 = vadd.f32 %v1208, %v1216
    %v1219 = vtanh.pop %v1218
    %1221 = vrot.lane.b32.xlu0 %v1219, 64
    %v1222 = vpop.permute.xlu0 %1221
    %v1224 = vmul.f32 %v1205, %v1222
    %1226 = vrot.lane.b32.xlu0 %v1224, 32
    %v1227 = vpop.permute.xlu0 %1226
    %1229 = vst.msk [vmem:[#allocation3 + $0x4] sm:$0x1] %vm460, %v1227
    %1230 = vmatprep.subr.bf16.mxu0 0
    %1231 = vmatpush1.bf16.msra.mxu0 %v225
    %1232 = vmatprep.subr.bf16.mxu0 0
    %1233 = vmatpush1.bf16.msra.mxu0 %v226
    %1234 = vmatprep.subr.bf16.mxu0 0
    %1235 = vmatpush1.bf16.msra.mxu0 0
    %1236 = vmatprep.subr.bf16.mxu0 0
    %1237 = vmatpush1.bf16.msra.mxu0 0
    %1238 = vmatprep.subr.bf16.mxu0 0
    %1239 = vmatpush1.bf16.msra.mxu0 0
    %1240 = vmatprep.subr.bf16.mxu0 0
    %1241 = vmatpush1.bf16.msra.mxu0 0
    %1242 = vmatprep.subr.bf16.mxu0 0
    %1243 = vmatpush1.bf16.msra.mxu0 0
    %1244 = vmatprep.subr.bf16.mxu0 0
    %1245 = vmatpush1.bf16.msra.mxu0 0
    %1246 = vmatprep.subr.bf16.mxu0 0
    %1247 = vmatpush1.bf16.msra.mxu0 0
    %1248 = vmatprep.subr.bf16.mxu0 0
    %1249 = vmatpush1.bf16.msra.mxu0 0
    %1250 = vmatprep.subr.bf16.mxu0 0
    %1251 = vmatpush1.bf16.msra.mxu0 0
    %1252 = vmatprep.subr.bf16.mxu0 0
    %1253 = vmatpush1.bf16.msra.mxu0 0
    %1254 = vmatprep.subr.bf16.mxu0 0
    %1255 = vmatpush1.bf16.msra.mxu0 0
    %1256 = vmatprep.subr.bf16.mxu0 0
    %1257 = vmatpush1.bf16.msra.mxu0 0
    %1258 = vmatprep.subr.bf16.mxu0 0
    %1259 = vmatpush1.bf16.msra.mxu0 0
    %1260 = vmatprep.subr.bf16.mxu0 0
    %1261 = vmatpush1.bf16.msra.mxu0 0
    %1262 = vmatprep.mubr.bf16.mxu0 0
    %1263 = vmatmul.mubr.bf16.gmra.mrb[0].mxu0 %v1157
    %v1264 = vpop.f32.mrb[0].mxu0
    %v1265 = vadd.f32 0.0, %v1264
    %v1266 = vpop.f32.mrb[0].mxu0
    %v1267 = vpop.f32.mrb[0].mxu0
    %v1268 = vpop.f32.mrb[0].mxu0
    %1269 = vdwg.mxu0
    %v1270 = vld [vmem:[#allocation2 + $0x5] sm:$0x1]
    %v1271 = vadd.f32 %v1270, %v1265
    %v1272 = vxor.u32 %v1271, 2147483648
    %v1273 = vmul.f32 %v1272, 1.442695
    %v1274 = vpow.pop %v1273
    %v1275 = vadd.f32 %v1274, 1.0
    %v1276 = vrcp.pop %v1275
    %v1277 = vmul.f32 1.0, %v1276
    %v1278 = vmul.f32 %v1277, 2.0
    %v1279 = vsub.f32 %v1278, 1.0
    %v1280 = vmul.f32 %v1277, %v1098
    %1282 = vrot.lane.b32.xlu0 %v1279, 64
    %v1283 = vpop.permute.xlu0 %1282
    %v1285 = vmul.f32 %v1277, %v1283
    %1287 = vrot.lane.b32.xlu0 %v1285, 32
    %v1288 = vpop.permute.xlu0 %1287
    %v1290 = vadd.f32 %v1280, %v1288
    %v1291 = vtanh.pop %v1290
    %1293 = vrot.lane.b32.xlu0 %v1291, 64
    %v1294 = vpop.permute.xlu0 %1293
    %v1296 = vmul.f32 %v1277, %v1294
    %v1297 = vpack.c.bf16 %v1224, %v1224
    %1299 = vrot.lane.b32.xlu0 %v1297, 32
    %v1300 = vpop.permute.xlu0 %1299
    %v1302 = vsel %vm214, %v1300, 0
    %1304 = vmatprep.subr.bf16.mxu0 0
    %1305 = vmatpush1.bf16.msra.mxu0 %v316
    %1306 = vmatprep.subr.bf16.mxu0 0
    %1307 = vmatpush1.bf16.msra.mxu0 %v317
    %1308 = vmatprep.subr.bf16.mxu0 0
    %1309 = vmatpush1.bf16.msra.mxu0 0
    %1310 = vmatprep.subr.bf16.mxu0 0
    %1311 = vmatpush1.bf16.msra.mxu0 0
    %1312 = vmatprep.subr.bf16.mxu0 0
    %1313 = vmatpush1.bf16.msra.mxu0 0
    %1314 = vmatprep.subr.bf16.mxu0 0
    %1315 = vmatpush1.bf16.msra.mxu0 0
    %1316 = vmatprep.subr.bf16.mxu0 0
    %1317 = vmatpush1.bf16.msra.mxu0 0
    %1318 = vmatprep.subr.bf16.mxu0 0
    %1319 = vmatpush1.bf16.msra.mxu0 0
    %1320 = vmatprep.subr.bf16.mxu0 0
    %1321 = vmatpush1.bf16.msra.mxu0 0
    %1322 = vmatprep.subr.bf16.mxu0 0
    %1323 = vmatpush1.bf16.msra.mxu0 0
    %1324 = vmatprep.subr.bf16.mxu0 0
    %1325 = vmatpush1.bf16.msra.mxu0 0
    %1326 = vmatprep.subr.bf16.mxu0 0
    %1327 = vmatpush1.bf16.msra.mxu0 0
    %1328 = vmatprep.subr.bf16.mxu0 0
    %1329 = vmatpush1.bf16.msra.mxu0 0
    %1330 = vmatprep.subr.bf16.mxu0 0
    %1331 = vmatpush1.bf16.msra.mxu0 0
    %1332 = vmatprep.subr.bf16.mxu0 0
    %1333 = vmatpush1.bf16.msra.mxu0 0
    %1334 = vmatprep.subr.bf16.mxu0 0
    %1335 = vmatpush1.bf16.msra.mxu0 0
    %1336 = vmatprep.mubr.bf16.mxu0 0
    %1337 = vmatmul.mubr.bf16.gmra.mrb[0].mxu0 %v1302
    %v1338 = vpop.f32.mrb[0].mxu0
    %v1339 = vadd.f32 0.0, %v1338
    %v1340 = vpop.f32.mrb[0].mxu0
    %v1341 = vpop.f32.mrb[0].mxu0
    %v1342 = vpop.f32.mrb[0].mxu0
    %1343 = vdwg.mxu0
    %v1344 = vpack.c.bf16 %v1296, %v1296
    %1346 = vrot.lane.b32.xlu0 %v1344, 32
    %v1347 = vpop.permute.xlu0 %1346
    %v1349 = vsel %vm214, %v1347, 0
    %1351 = vmatprep.subr.bf16.mxu0 0
    %1352 = vmatpush1.bf16.msra.mxu0 %v375
    %1353 = vmatprep.subr.bf16.mxu0 0
    %1354 = vmatpush1.bf16.msra.mxu0 %v376
    %1355 = vmatprep.subr.bf16.mxu0 0
    %1356 = vmatpush1.bf16.msra.mxu0 0
    %1357 = vmatprep.subr.bf16.mxu0 0
    %1358 = vmatpush1.bf16.msra.mxu0 0
    %1359 = vmatprep.subr.bf16.mxu0 0
    %1360 = vmatpush1.bf16.msra.mxu0 0
    %1361 = vmatprep.subr.bf16.mxu0 0
    %1362 = vmatpush1.bf16.msra.mxu0 0
    %1363 = vmatprep.subr.bf16.mxu0 0
    %1364 = vmatpush1.bf16.msra.mxu0 0
    %1365 = vmatprep.subr.bf16.mxu0 0
    %1366 = vmatpush1.bf16.msra.mxu0 0
    %1367 = vmatprep.subr.bf16.mxu0 0
    %1368 = vmatpush1.bf16.msra.mxu0 0
    %1369 = vmatprep.subr.bf16.mxu0 0
    %1370 = vmatpush1.bf16.msra.mxu0 0
    %1371 = vmatprep.subr.bf16.mxu0 0
    %1372 = vmatpush1.bf16.msra.mxu0 0
    %1373 = vmatprep.subr.bf16.mxu0 0
    %1374 = vmatpush1.bf16.msra.mxu0 0
    %1375 = vmatprep.subr.bf16.mxu0 0
    %1376 = vmatpush1.bf16.msra.mxu0 0
    %1377 = vmatprep.subr.bf16.mxu0 0
    %1378 = vmatpush1.bf16.msra.mxu0 0
    %1379 = vmatprep.subr.bf16.mxu0 0
    %1380 = vmatpush1.bf16.msra.mxu0 0
    %1381 = vmatprep.subr.bf16.mxu0 0
    %1382 = vmatpush1.bf16.msra.mxu0 0
    %1383 = vmatprep.mubr.bf16.mxu0 0
    %1384 = vmatmul.mubr.bf16.gmra.mrb[0].mxu0 %v1349
    %v1385 = vpop.f32.mrb[0].mxu0
    %v1386 = vadd.f32 %v1339, %v1385
    %v1387 = vpop.f32.mrb[0].mxu0
    %v1388 = vpop.f32.mrb[0].mxu0
    %v1389 = vpop.f32.mrb[0].mxu0
    %1390 = vdwg.mxu0
    %v1391 = vadd.f32 %v1386, %v201
    %v1392 = vxor.u32 %v1391, 2147483648
    %v1393 = vmul.f32 %v1392, 1.442695
    %v1394 = vpow.pop %v1393
    %v1395 = vadd.f32 %v1394, 1.0
    %v1396 = vrcp.pop %v1395
    %v1397 = vmul.f32 1.0, %v1396
    %v1398 = vmul.f32 %v1397, 2.0
    %v1399 = vsub.f32 %v1398, 1.0
    %v1400 = vmul.f32 %v1397, %v1218
    %1402 = vrot.lane.b32.xlu0 %v1399, 64
    %v1403 = vpop.permute.xlu0 %1402
    %v1405 = vmul.f32 %v1397, %v1403
    %1407 = vrot.lane.b32.xlu0 %v1405, 32
    %v1408 = vpop.permute.xlu0 %1407
    %v1410 = vadd.f32 %v1400, %v1408
    %v1411 = vtanh.pop %v1410
    %1413 = vrot.lane.b32.xlu0 %v1411, 64
    %v1414 = vpop.permute.xlu0 %1413
    %v1416 = vmul.f32 %v1397, %v1414
    %1418 = vrot.lane.b32.xlu0 %v1416, 32
    %v1419 = vpop.permute.xlu0 %1418
    %1421 = vst.msk [vmem:[#allocation3 + $0x5] sm:$0x1] %vm460, %v1419
    %1422 = vmatprep.subr.bf16.mxu0 0
    %1423 = vmatpush1.bf16.msra.mxu0 %v225
    %1424 = vmatprep.subr.bf16.mxu0 0
    %1425 = vmatpush1.bf16.msra.mxu0 %v226
    %1426 = vmatprep.subr.bf16.mxu0 0
    %1427 = vmatpush1.bf16.msra.mxu0 0
    %1428 = vmatprep.subr.bf16.mxu0 0
    %1429 = vmatpush1.bf16.msra.mxu0 0
    %1430 = vmatprep.subr.bf16.mxu0 0
    %1431 = vmatpush1.bf16.msra.mxu0 0
    %1432 = vmatprep.subr.bf16.mxu0 0
    %1433 = vmatpush1.bf16.msra.mxu0 0
    %1434 = vmatprep.subr.bf16.mxu0 0
    %1435 = vmatpush1.bf16.msra.mxu0 0
    %1436 = vmatprep.subr.bf16.mxu0 0
    %1437 = vmatpush1.bf16.msra.mxu0 0
    %1438 = vmatprep.subr.bf16.mxu0 0
    %1439 = vmatpush1.bf16.msra.mxu0 0
    %1440 = vmatprep.subr.bf16.mxu0 0
    %1441 = vmatpush1.bf16.msra.mxu0 0
    %1442 = vmatprep.subr.bf16.mxu0 0
    %1443 = vmatpush1.bf16.msra.mxu0 0
    %1444 = vmatprep.subr.bf16.mxu0 0
    %1445 = vmatpush1.bf16.msra.mxu0 0
    %1446 = vmatprep.subr.bf16.mxu0 0
    %1447 = vmatpush1.bf16.msra.mxu0 0
    %1448 = vmatprep.subr.bf16.mxu0 0
    %1449 = vmatpush1.bf16.msra.mxu0 0
    %1450 = vmatprep.subr.bf16.mxu0 0
    %1451 = vmatpush1.bf16.msra.mxu0 0
    %1452 = vmatprep.subr.bf16.mxu0 0
    %1453 = vmatpush1.bf16.msra.mxu0 0
    %1454 = vmatprep.mubr.bf16.mxu0 0
    %1455 = vmatmul.mubr.bf16.gmra.mrb[0].mxu0 %v1349
    %v1456 = vpop.f32.mrb[0].mxu0
    %v1457 = vadd.f32 0.0, %v1456
    %v1458 = vpop.f32.mrb[0].mxu0
    %v1459 = vpop.f32.mrb[0].mxu0
    %v1460 = vpop.f32.mrb[0].mxu0
    %1461 = vdwg.mxu0
    %v1462 = vld [vmem:[#allocation2 + $0x6] sm:$0x1]
    %v1463 = vadd.f32 %v1462, %v1457
    %v1464 = vxor.u32 %v1463, 2147483648
    %v1465 = vmul.f32 %v1464, 1.442695
    %v1466 = vpow.pop %v1465
    %v1467 = vadd.f32 %v1466, 1.0
    %v1468 = vrcp.pop %v1467
    %v1469 = vmul.f32 1.0, %v1468
    %v1470 = vmul.f32 %v1469, 2.0
    %v1471 = vsub.f32 %v1470, 1.0
    %v1472 = vmul.f32 %v1469, %v1290
    %1474 = vrot.lane.b32.xlu0 %v1471, 64
    %v1475 = vpop.permute.xlu0 %1474
    %v1477 = vmul.f32 %v1469, %v1475
    %1479 = vrot.lane.b32.xlu0 %v1477, 32
    %v1480 = vpop.permute.xlu0 %1479
    %v1482 = vadd.f32 %v1472, %v1480
    %v1483 = vtanh.pop %v1482
    %1485 = vrot.lane.b32.xlu0 %v1483, 64
    %v1486 = vpop.permute.xlu0 %1485
    %v1488 = vmul.f32 %v1469, %v1486
    %v1489 = vpack.c.bf16 %v1416, %v1416
    %1491 = vrot.lane.b32.xlu0 %v1489, 32
    %v1492 = vpop.permute.xlu0 %1491
    %v1494 = vsel %vm214, %v1492, 0
    %1496 = vmatprep.subr.bf16.mxu0 0
    %1497 = vmatpush1.bf16.msra.mxu0 %v316
    %1498 = vmatprep.subr.bf16.mxu0 0
    %1499 = vmatpush1.bf16.msra.mxu0 %v317
    %1500 = vmatprep.subr.bf16.mxu0 0
    %1501 = vmatpush1.bf16.msra.mxu0 0
    %1502 = vmatprep.subr.bf16.mxu0 0
    %1503 = vmatpush1.bf16.msra.mxu0 0
    %1504 = vmatprep.subr.bf16.mxu0 0
    %1505 = vmatpush1.bf16.msra.mxu0 0
    %1506 = vmatprep.subr.bf16.mxu0 0
    %1507 = vmatpush1.bf16.msra.mxu0 0
    %1508 = vmatprep.subr.bf16.mxu0 0
    %1509 = vmatpush1.bf16.msra.mxu0 0
    %1510 = vmatprep.subr.bf16.mxu0 0
    %1511 = vmatpush1.bf16.msra.mxu0 0
    %1512 = vmatprep.subr.bf16.mxu0 0
    %1513 = vmatpush1.bf16.msra.mxu0 0
    %1514 = vmatprep.subr.bf16.mxu0 0
    %1515 = vmatpush1.bf16.msra.mxu0 0
    %1516 = vmatprep.subr.bf16.mxu0 0
    %1517 = vmatpush1.bf16.msra.mxu0 0
    %1518 = vmatprep.subr.bf16.mxu0 0
    %1519 = vmatpush1.bf16.msra.mxu0 0
    %1520 = vmatprep.subr.bf16.mxu0 0
    %1521 = vmatpush1.bf16.msra.mxu0 0
    %1522 = vmatprep.subr.bf16.mxu0 0
    %1523 = vmatpush1.bf16.msra.mxu0 0
    %1524 = vmatprep.subr.bf16.mxu0 0
    %1525 = vmatpush1.bf16.msra.mxu0 0
    %1526 = vmatprep.subr.bf16.mxu0 0
    %1527 = vmatpush1.bf16.msra.mxu0 0
    %1528 = vmatprep.mubr.bf16.mxu0 0
    %1529 = vmatmul.mubr.bf16.gmra.mrb[0].mxu0 %v1494
    %v1530 = vpop.f32.mrb[0].mxu0
    %v1531 = vadd.f32 0.0, %v1530
    %v1532 = vpop.f32.mrb[0].mxu0
    %v1533 = vpop.f32.mrb[0].mxu0
    %v1534 = vpop.f32.mrb[0].mxu0
    %1535 = vdwg.mxu0
    %v1536 = vpack.c.bf16 %v1488, %v1488
    %1538 = vrot.lane.b32.xlu0 %v1536, 32
    %v1539 = vpop.permute.xlu0 %1538
    %v1541 = vsel %vm214, %v1539, 0
    %1543 = vmatprep.subr.bf16.mxu0 0
    %1544 = vmatpush1.bf16.msra.mxu0 %v375
    %1545 = vmatprep.subr.bf16.mxu0 0
    %1546 = vmatpush1.bf16.msra.mxu0 %v376
    %1547 = vmatprep.subr.bf16.mxu0 0
    %1548 = vmatpush1.bf16.msra.mxu0 0
    %1549 = vmatprep.subr.bf16.mxu0 0
    %1550 = vmatpush1.bf16.msra.mxu0 0
    %1551 = vmatprep.subr.bf16.mxu0 0
    %1552 = vmatpush1.bf16.msra.mxu0 0
    %1553 = vmatprep.subr.bf16.mxu0 0
    %1554 = vmatpush1.bf16.msra.mxu0 0
    %1555 = vmatprep.subr.bf16.mxu0 0
    %1556 = vmatpush1.bf16.msra.mxu0 0
    %1557 = vmatprep.subr.bf16.mxu0 0
    %1558 = vmatpush1.bf16.msra.mxu0 0
    %1559 = vmatprep.subr.bf16.mxu0 0
    %1560 = vmatpush1.bf16.msra.mxu0 0
    %1561 = vmatprep.subr.bf16.mxu0 0
    %1562 = vmatpush1.bf16.msra.mxu0 0
    %1563 = vmatprep.subr.bf16.mxu0 0
    %1564 = vmatpush1.bf16.msra.mxu0 0
    %1565 = vmatprep.subr.bf16.mxu0 0
    %1566 = vmatpush1.bf16.msra.mxu0 0
    %1567 = vmatprep.subr.bf16.mxu0 0
    %1568 = vmatpush1.bf16.msra.mxu0 0
    %1569 = vmatprep.subr.bf16.mxu0 0
    %1570 = vmatpush1.bf16.msra.mxu0 0
    %1571 = vmatprep.subr.bf16.mxu0 0
    %1572 = vmatpush1.bf16.msra.mxu0 0
    %1573 = vmatprep.subr.bf16.mxu0 0
    %1574 = vmatpush1.bf16.msra.mxu0 0
    %1575 = vmatprep.mubr.bf16.mxu0 0
    %1576 = vmatmul.mubr.bf16.gmra.mrb[0].mxu0 %v1541
    %v1577 = vpop.f32.mrb[0].mxu0
    %v1578 = vadd.f32 %v1531, %v1577
    %v1579 = vpop.f32.mrb[0].mxu0
    %v1580 = vpop.f32.mrb[0].mxu0
    %v1581 = vpop.f32.mrb[0].mxu0
    %1582 = vdwg.mxu0
    %v1583 = vadd.f32 %v1578, %v201
    %v1584 = vxor.u32 %v1583, 2147483648
    %v1585 = vmul.f32 %v1584, 1.442695
    %v1586 = vpow.pop %v1585
    %v1587 = vadd.f32 %v1586, 1.0
    %v1588 = vrcp.pop %v1587
    %v1589 = vmul.f32 1.0, %v1588
    %v1590 = vmul.f32 %v1589, 2.0
    %v1591 = vsub.f32 %v1590, 1.0
    %v1592 = vmul.f32 %v1589, %v1410
    %1594 = vrot.lane.b32.xlu0 %v1591, 64
    %v1595 = vpop.permute.xlu0 %1594
    %v1597 = vmul.f32 %v1589, %v1595
    %1599 = vrot.lane.b32.xlu0 %v1597, 32
    %v1600 = vpop.permute.xlu0 %1599
    %v1602 = vadd.f32 %v1592, %v1600
    %v1603 = vtanh.pop %v1602
    %1605 = vrot.lane.b32.xlu0 %v1603, 64
    %v1606 = vpop.permute.xlu0 %1605
    %v1608 = vmul.f32 %v1589, %v1606
    %1610 = vrot.lane.b32.xlu0 %v1608, 32
    %v1611 = vpop.permute.xlu0 %1610
    %1613 = vst.msk [vmem:[#allocation3 + $0x6] sm:$0x1] %vm460, %v1611
    %1614 = vmatprep.subr.bf16.mxu0 0
    %1615 = vmatpush1.bf16.msra.mxu0 %v225
    %1616 = vmatprep.subr.bf16.mxu0 0
    %1617 = vmatpush1.bf16.msra.mxu0 %v226
    %1618 = vmatprep.subr.bf16.mxu0 0
    %1619 = vmatpush1.bf16.msra.mxu0 0
    %1620 = vmatprep.subr.bf16.mxu0 0
    %1621 = vmatpush1.bf16.msra.mxu0 0
    %1622 = vmatprep.subr.bf16.mxu0 0
    %1623 = vmatpush1.bf16.msra.mxu0 0
    %1624 = vmatprep.subr.bf16.mxu0 0
    %1625 = vmatpush1.bf16.msra.mxu0 0
    %1626 = vmatprep.subr.bf16.mxu0 0
    %1627 = vmatpush1.bf16.msra.mxu0 0
    %1628 = vmatprep.subr.bf16.mxu0 0
    %1629 = vmatpush1.bf16.msra.mxu0 0
    %1630 = vmatprep.subr.bf16.mxu0 0
    %1631 = vmatpush1.bf16.msra.mxu0 0
    %1632 = vmatprep.subr.bf16.mxu0 0
    %1633 = vmatpush1.bf16.msra.mxu0 0
    %1634 = vmatprep.subr.bf16.mxu0 0
    %1635 = vmatpush1.bf16.msra.mxu0 0
    %1636 = vmatprep.subr.bf16.mxu0 0
    %1637 = vmatpush1.bf16.msra.mxu0 0
    %1638 = vmatprep.subr.bf16.mxu0 0
    %1639 = vmatpush1.bf16.msra.mxu0 0
    %1640 = vmatprep.subr.bf16.mxu0 0
    %1641 = vmatpush1.bf16.msra.mxu0 0
    %1642 = vmatprep.subr.bf16.mxu0 0
    %1643 = vmatpush1.bf16.msra.mxu0 0
    %1644 = vmatprep.subr.bf16.mxu0 0
    %1645 = vmatpush1.bf16.msra.mxu0 0
    %1646 = vmatprep.mubr.bf16.mxu0 0
    %1647 = vmatmul.mubr.bf16.gmra.mrb[0].mxu0 %v1541
    %v1648 = vpop.f32.mrb[0].mxu0
    %v1649 = vadd.f32 0.0, %v1648
    %v1650 = vpop.f32.mrb[0].mxu0
    %v1651 = vpop.f32.mrb[0].mxu0
    %v1652 = vpop.f32.mrb[0].mxu0
    %1653 = vdwg.mxu0
    %v1654 = vld [vmem:[#allocation2 + $0x7] sm:$0x1]
    %v1655 = vadd.f32 %v1654, %v1649
    %v1656 = vxor.u32 %v1655, 2147483648
    %v1657 = vmul.f32 %v1656, 1.442695
    %v1658 = vpow.pop %v1657
    %v1659 = vadd.f32 %v1658, 1.0
    %v1660 = vrcp.pop %v1659
    %v1661 = vmul.f32 1.0, %v1660
    %v1662 = vmul.f32 %v1661, 2.0
    %v1663 = vsub.f32 %v1662, 1.0
    %v1664 = vmul.f32 %v1661, %v1482
    %1666 = vrot.lane.b32.xlu0 %v1663, 64
    %v1667 = vpop.permute.xlu0 %1666
    %v1669 = vmul.f32 %v1661, %v1667
    %1671 = vrot.lane.b32.xlu0 %v1669, 32
    %v1672 = vpop.permute.xlu0 %1671
    %v1674 = vadd.f32 %v1664, %v1672
    %v1675 = vtanh.pop %v1674
    %1677 = vrot.lane.b32.xlu0 %v1675, 64
    %v1678 = vpop.permute.xlu0 %1677
    %v1680 = vmul.f32 %v1661, %v1678
    %v1681 = vpack.c.bf16 %v1608, %v1608
    %1683 = vrot.lane.b32.xlu0 %v1681, 32
    %v1684 = vpop.permute.xlu0 %1683
    %v1686 = vsel %vm214, %v1684, 0
    %1688 = vmatprep.subr.bf16.mxu0 0
    %1689 = vmatpush1.bf16.msra.mxu0 %v316
    %1690 = vmatprep.subr.bf16.mxu0 0
    %1691 = vmatpush1.bf16.msra.mxu0 %v317
    %1692 = vmatprep.subr.bf16.mxu0 0
    %1693 = vmatpush1.bf16.msra.mxu0 0
    %1694 = vmatprep.subr.bf16.mxu0 0
    %1695 = vmatpush1.bf16.msra.mxu0 0
    %1696 = vmatprep.subr.bf16.mxu0 0
    %1697 = vmatpush1.bf16.msra.mxu0 0
    %1698 = vmatprep.subr.bf16.mxu0 0
    %1699 = vmatpush1.bf16.msra.mxu0 0
    %1700 = vmatprep.subr.bf16.mxu0 0
    %1701 = vmatpush1.bf16.msra.mxu0 0
    %1702 = vmatprep.subr.bf16.mxu0 0
    %1703 = vmatpush1.bf16.msra.mxu0 0
    %1704 = vmatprep.subr.bf16.mxu0 0
    %1705 = vmatpush1.bf16.msra.mxu0 0
    %1706 = vmatprep.subr.bf16.mxu0 0
    %1707 = vmatpush1.bf16.msra.mxu0 0
    %1708 = vmatprep.subr.bf16.mxu0 0
    %1709 = vmatpush1.bf16.msra.mxu0 0
    %1710 = vmatprep.subr.bf16.mxu0 0
    %1711 = vmatpush1.bf16.msra.mxu0 0
    %1712 = vmatprep.subr.bf16.mxu0 0
    %1713 = vmatpush1.bf16.msra.mxu0 0
    %1714 = vmatprep.subr.bf16.mxu0 0
    %1715 = vmatpush1.bf16.msra.mxu0 0
    %1716 = vmatprep.subr.bf16.mxu0 0
    %1717 = vmatpush1.bf16.msra.mxu0 0
    %1718 = vmatprep.subr.bf16.mxu0 0
    %1719 = vmatpush1.bf16.msra.mxu0 0
    %1720 = vmatprep.mubr.bf16.mxu0 0
    %1721 = vmatmul.mubr.bf16.gmra.mrb[0].mxu0 %v1686
    %v1722 = vpop.f32.mrb[0].mxu0
    %v1723 = vadd.f32 0.0, %v1722
    %v1724 = vpop.f32.mrb[0].mxu0
    %v1725 = vpop.f32.mrb[0].mxu0
    %v1726 = vpop.f32.mrb[0].mxu0
    %1727 = vdwg.mxu0
    %v1728 = vpack.c.bf16 %v1680, %v1680
    %1730 = vrot.lane.b32.xlu0 %v1728, 32
    %v1731 = vpop.permute.xlu0 %1730
    %v1733 = vsel %vm214, %v1731, 0
    %1735 = vmatprep.subr.bf16.mxu0 0
    %1736 = vmatpush1.bf16.msra.mxu0 %v375
    %1737 = vmatprep.subr.bf16.mxu0 0
    %1738 = vmatpush1.bf16.msra.mxu0 %v376
    %1739 = vmatprep.subr.bf16.mxu0 0
    %1740 = vmatpush1.bf16.msra.mxu0 0
    %1741 = vmatprep.subr.bf16.mxu0 0
    %1742 = vmatpush1.bf16.msra.mxu0 0
    %1743 = vmatprep.subr.bf16.mxu0 0
    %1744 = vmatpush1.bf16.msra.mxu0 0
    %1745 = vmatprep.subr.bf16.mxu0 0
    %1746 = vmatpush1.bf16.msra.mxu0 0
    %1747 = vmatprep.subr.bf16.mxu0 0
    %1748 = vmatpush1.bf16.msra.mxu0 0
    %1749 = vmatprep.subr.bf16.mxu0 0
    %1750 = vmatpush1.bf16.msra.mxu0 0
    %1751 = vmatprep.subr.bf16.mxu0 0
    %1752 = vmatpush1.bf16.msra.mxu0 0
    %1753 = vmatprep.subr.bf16.mxu0 0
    %1754 = vmatpush1.bf16.msra.mxu0 0
    %1755 = vmatprep.subr.bf16.mxu0 0
    %1756 = vmatpush1.bf16.msra.mxu0 0
    %1757 = vmatprep.subr.bf16.mxu0 0
    %1758 = vmatpush1.bf16.msra.mxu0 0
    %1759 = vmatprep.subr.bf16.mxu0 0
    %1760 = vmatpush1.bf16.msra.mxu0 0
    %1761 = vmatprep.subr.bf16.mxu0 0
    %1762 = vmatpush1.bf16.msra.mxu0 0
    %1763 = vmatprep.subr.bf16.mxu0 0
    %1764 = vmatpush1.bf16.msra.mxu0 0
    %1765 = vmatprep.subr.bf16.mxu0 0
    %1766 = vmatpush1.bf16.msra.mxu0 0
    %1767 = vmatprep.mubr.bf16.mxu0 0
    %1768 = vmatmul.mubr.bf16.gmra.mrb[0].mxu0 %v1733
    %v1769 = vpop.f32.mrb[0].mxu0
    %v1770 = vadd.f32 %v1723, %v1769
    %v1771 = vpop.f32.mrb[0].mxu0
    %v1772 = vpop.f32.mrb[0].mxu0
    %v1773 = vpop.f32.mrb[0].mxu0
    %1774 = vdwg.mxu0
    %v1775 = vadd.f32 %v1770, %v201
    %v1776 = vxor.u32 %v1775, 2147483648
    %v1777 = vmul.f32 %v1776, 1.442695
    %v1778 = vpow.pop %v1777
    %v1779 = vadd.f32 %v1778, 1.0
    %v1780 = vrcp.pop %v1779
    %v1781 = vmul.f32 1.0, %v1780
    %v1782 = vmul.f32 %v1781, 2.0
    %v1783 = vsub.f32 %v1782, 1.0
    %v1784 = vmul.f32 %v1781, %v1602
    %1786 = vrot.lane.b32.xlu0 %v1783, 64
    %v1787 = vpop.permute.xlu0 %1786
    %v1789 = vmul.f32 %v1781, %v1787
    %1791 = vrot.lane.b32.xlu0 %v1789, 32
    %v1792 = vpop.permute.xlu0 %1791
    %v1794 = vadd.f32 %v1784, %v1792
    %v1795 = vtanh.pop %v1794
    %1797 = vrot.lane.b32.xlu0 %v1795, 64
    %v1798 = vpop.permute.xlu0 %1797
    %v1800 = vmul.f32 %v1781, %v1798
    %1802 = vrot.lane.b32.xlu0 %v1800, 32
    %v1803 = vpop.permute.xlu0 %1802
    %1805 = vst.msk [vmem:[#allocation3 + $0x7] sm:$0x1] %vm460, %v1803
    %v1806 = vld [vmem:[#allocation3] sm:$0xff]
    %v1808 = vlaneseq
    %v1809 = vshrl.u32 %v1808, 7
    %v1810 = vsub.s32 0, %v1809
    %v1811 = vrot.slane %v206, %v1810
    %v1814 = vsel %vm214, %v1806, 0
    %1816 = vmatprep.subr.mxu0 0.0
    %1817 = vmatpush1.msra.mxu0 %v202
    %1818 = vmatprep.subr.mxu0 0.0
    %1819 = vmatpush1.msra.mxu0 %v203
    %1820 = vmatprep.subr.mxu0 0.0
    %1821 = vmatpush1.msra.mxu0 %v204
    %1822 = vmatprep.subr.mxu0 0.0
    %1823 = vmatpush1.msra.mxu0 %v205
    %1824 = vmatprep.subr.mxu0 0.0
    %1825 = vmatpush1.msra.mxu0 0.0
    %1826 = vmatprep.subr.mxu0 0.0
    %1827 = vmatpush1.msra.mxu0 0.0
    %1828 = vmatprep.subr.mxu0 0.0
    %1829 = vmatpush1.msra.mxu0 0.0
    %1830 = vmatprep.subr.mxu0 0.0
    %1831 = vmatpush1.msra.mxu0 0.0
    %1832 = vmatprep.subr.mxu0 0.0
    %1833 = vmatpush1.msra.mxu0 0.0
    %1834 = vmatprep.subr.mxu0 0.0
    %1835 = vmatpush1.msra.mxu0 0.0
    %1836 = vmatprep.subr.mxu0 0.0
    %1837 = vmatpush1.msra.mxu0 0.0
    %1838 = vmatprep.subr.mxu0 0.0
    %1839 = vmatpush1.msra.mxu0 0.0
    %1840 = vmatprep.subr.mxu0 0.0
    %1841 = vmatpush1.msra.mxu0 0.0
    %1842 = vmatprep.subr.mxu0 0.0
    %1843 = vmatpush1.msra.mxu0 0.0
    %1844 = vmatprep.subr.mxu0 0.0
    %1845 = vmatpush1.msra.mxu0 0.0
    %1846 = vmatprep.subr.mxu0 0.0
    %1847 = vmatpush1.msra.mxu0 0.0
    %1848 = vmatprep.subr.mxu0 0.0
    %1849 = vmatpush1.msra.mxu0 0.0
    %1850 = vmatprep.subr.mxu0 0.0
    %1851 = vmatpush1.msra.mxu0 0.0
    %1852 = vmatprep.subr.mxu0 0.0
    %1853 = vmatpush1.msra.mxu0 0.0
    %1854 = vmatprep.subr.mxu0 0.0
    %1855 = vmatpush1.msra.mxu0 0.0
    %1856 = vmatprep.subr.mxu0 0.0
    %1857 = vmatpush1.msra.mxu0 0.0
    %1858 = vmatprep.subr.mxu0 0.0
    %1859 = vmatpush1.msra.mxu0 0.0
    %1860 = vmatprep.subr.mxu0 0.0
    %1861 = vmatpush1.msra.mxu0 0.0
    %1862 = vmatprep.subr.mxu0 0.0
    %1863 = vmatpush1.msra.mxu0 0.0
    %1864 = vmatprep.subr.mxu0 0.0
    %1865 = vmatpush1.msra.mxu0 0.0
    %1866 = vmatprep.subr.mxu0 0.0
    %1867 = vmatpush1.msra.mxu0 0.0
    %1868 = vmatprep.subr.mxu0 0.0
    %1869 = vmatpush1.msra.mxu0 0.0
    %1870 = vmatprep.subr.mxu0 0.0
    %1871 = vmatpush1.msra.mxu0 0.0
    %1872 = vmatprep.subr.mxu0 0.0
    %1873 = vmatpush1.msra.mxu0 0.0
    %1874 = vmatprep.subr.mxu0 0.0
    %1875 = vmatpush1.msra.mxu0 0.0
    %1876 = vmatprep.subr.mxu0 0.0
    %1877 = vmatpush1.msra.mxu0 0.0
    %1878 = vmatprep.subr.mxu0 0.0
    %1879 = vmatpush1.msra.mxu0 0.0
    %1880 = vmatprep.mubr.f32.mxu0 0.0
    %1881 = vmatmul.mubr.f32.gmra.mrb[0].mxu0 %v1814
    %v1882 = vpop.f32.mrb[0].mxu0
    %v1883 = vadd.f32 %v1811, %v1882
    %v1884 = vpop.f32.mrb[0].mxu0
    %1885 = vdwg.mxu0
    %1886 = vst [vmem:[#allocation13] sm:$0xff] %v1883
    %v1887 = vlaneseq
    %v1888 = vshrl.u32 %v1887, 7
    %v1889 = vlaneseq
    %v1890 = vand.u32 %v1889, 127
    %vm1891 = vcmp.le.s32.totalorder %v1890, %v1888
    %v1892 = vsel %vm1891, 1, 0
    %v1893 = vcvt.s32.f32 %v1892
    %v1894 = vld [vmem:[%s8] sm:$0x1]
    %v1896 = vsel %vm111, %v1893, 0
    %1898 = vmatprep.subr.mxu0 0.0
    %1899 = vmatpush1.msra.mxu0 %v1883
    %1900 = vmatprep.subr.mxu0 0.0
    %1901 = vmatpush1.msra.mxu0 0.0
    %1902 = vmatprep.subr.mxu0 0.0
    %1903 = vmatpush1.msra.mxu0 0.0
    %1904 = vmatprep.subr.mxu0 0.0
    %1905 = vmatpush1.msra.mxu0 0.0
    %1906 = vmatprep.subr.mxu0 0.0
    %1907 = vmatpush1.msra.mxu0 0.0
    %1908 = vmatprep.subr.mxu0 0.0
    %1909 = vmatpush1.msra.mxu0 0.0
    %1910 = vmatprep.subr.mxu0 0.0
    %1911 = vmatpush1.msra.mxu0 0.0
    %1912 = vmatprep.subr.mxu0 0.0
    %1913 = vmatpush1.msra.mxu0 0.0
    %1914 = vmatprep.subr.mxu0 0.0
    %1915 = vmatpush1.msra.mxu0 0.0
    %1916 = vmatprep.subr.mxu0 0.0
    %1917 = vmatpush1.msra.mxu0 0.0
    %1918 = vmatprep.subr.mxu0 0.0
    %1919 = vmatpush1.msra.mxu0 0.0
    %1920 = vmatprep.subr.mxu0 0.0
    %1921 = vmatpush1.msra.mxu0 0.0
    %1922 = vmatprep.subr.mxu0 0.0
    %1923 = vmatpush1.msra.mxu0 0.0
    %1924 = vmatprep.subr.mxu0 0.0
    %1925 = vmatpush1.msra.mxu0 0.0
    %1926 = vmatprep.subr.mxu0 0.0
    %1927 = vmatpush1.msra.mxu0 0.0
    %1928 = vmatprep.subr.mxu0 0.0
    %1929 = vmatpush1.msra.mxu0 0.0
    %1930 = vmatprep.subr.mxu0 0.0
    %1931 = vmatpush1.msra.mxu0 0.0
    %1932 = vmatprep.subr.mxu0 0.0
    %1933 = vmatpush1.msra.mxu0 0.0
    %1934 = vmatprep.subr.mxu0 0.0
    %1935 = vmatpush1.msra.mxu0 0.0
    %1936 = vmatprep.subr.mxu0 0.0
    %1937 = vmatpush1.msra.mxu0 0.0
    %1938 = vmatprep.subr.mxu0 0.0
    %1939 = vmatpush1.msra.mxu0 0.0
    %1940 = vmatprep.subr.mxu0 0.0
    %1941 = vmatpush1.msra.mxu0 0.0
    %1942 = vmatprep.subr.mxu0 0.0
    %1943 = vmatpush1.msra.mxu0 0.0
    %1944 = vmatprep.subr.mxu0 0.0
    %1945 = vmatpush1.msra.mxu0 0.0
    %1946 = vmatprep.subr.mxu0 0.0
    %1947 = vmatpush1.msra.mxu0 0.0
    %1948 = vmatprep.subr.mxu0 0.0
    %1949 = vmatpush1.msra.mxu0 0.0
    %1950 = vmatprep.subr.mxu0 0.0
    %1951 = vmatpush1.msra.mxu0 0.0
    %1952 = vmatprep.subr.mxu0 0.0
    %1953 = vmatpush1.msra.mxu0 0.0
    %1954 = vmatprep.subr.mxu0 0.0
    %1955 = vmatpush1.msra.mxu0 0.0
    %1956 = vmatprep.subr.mxu0 0.0
    %1957 = vmatpush1.msra.mxu0 0.0
    %1958 = vmatprep.subr.mxu0 0.0
    %1959 = vmatpush1.msra.mxu0 0.0
    %1960 = vmatprep.subr.mxu0 0.0
    %1961 = vmatpush1.msra.mxu0 0.0
    %1962 = vmatprep.mubr.f32.mxu0 0.0
    %1963 = vmatmul.mubr.f32.gmra.mrb[0].mxu0 %v1896
    %v1964 = vpop.f32.mrb[0].mxu0
    %v1965 = vadd.f32 0.0, %v1964
    %v1966 = vpop.f32.mrb[0].mxu0
    %1967 = vdwg.mxu0
    %v1969 = vlaneseq
    %v1970 = vshrl.u32 %v1969, 7
    %v1971 = vsub.s32 0, %v1970
    %v1972 = vrot.slane %v1894, %v1971
    %v1974 = vadd.f32 %v1972, %v1965
    %1975 = vst [vmem:[#allocation14] sm:$0xff] %v1974
    %1977 = vrot.lane.b32.xlu0 %v1680, 32
    %v1978 = vpop.permute.xlu0 %1977
    %1980 = vst.msk [vmem:[#allocation16] sm:$0x1] %vm460, %v1978
    %1982 = vrot.lane.b32.xlu0 %v1674, 96
    %v1983 = vpop.permute.xlu0 %1982
    %s1985 = scalar_lea.vmem [#allocation16], 1
    %1986 = vst.msk [vmem:[%s1985] sm:$0x1] %vm460, %v1983
    %s1987 = scalar_lea.vmem [#allocation16], 2
    %1988 = vst.msk [vmem:[%s1987] sm:$0x1] %vm460, %v1803
    %1990 = vrot.lane.b32.xlu0 %v1794, 96
    %v1991 = vpop.permute.xlu0 %1990
    %s1993 = scalar_lea.vmem [#allocation16], 3
    %1994 = vst.msk [vmem:[%s1993] sm:$0x1] %vm460, %v1991
    // Predicated region
    $region58: #{step.1} parent=1 // pred_check
      _
    $region59: #{step.1} parent=1 // pred_check_branch
      %1996 = sbr.rel (0) target = $region61
    $region60: #{step.1} parent=1 // pred_region
      %s1998 = ssub.s32 128, 128
      %1999 = vsyncadd [#allocation6], %s1998
      %s2001 = sshll.u32 [#allocation13], 4
      %s2002 = int_to_ptr.vmem [resolvable:$true] %s2001
      %2004 = dma.vmem_to_hbm [thread:$0]  %s2002, 128, %s9, [#allocation6]
    $region61: #{step.1} parent=1 // pred_fallthru
      _
    // Predicated region
    $region62: #{step.1} parent=1 // pred_check
      _
    $region63: #{step.1} parent=1 // pred_check_branch
      %2006 = sbr.rel (0) target = $region65
    $region64: #{step.1} parent=1 // pred_region
      %s2008 = ssub.s32 128, 128
      %2009 = vsyncadd [#allocation15], %s2008
      %s2011 = sshll.u32 [#allocation14], 4
      %s2012 = int_to_ptr.vmem [resolvable:$true] %s2011
      %2014 = dma.vmem_to_hbm [thread:$0]  %s2012, 128, %s10, [#allocation15]
    $region65: #{step.1} parent=1 // pred_fallthru
      _
    // Predicated region
    $region66: #{step.1} parent=1 // pred_check
      _
    $region67: #{step.1} parent=1 // pred_check_branch
      %2016 = sbr.rel (0) target = $region69
    $region68: #{step.1} parent=1 // pred_region
      %s2018 = ssub.s32 64, 64
      %2019 = vsyncadd [#allocation15], %s2018
      %s2020 = sshll.u32 [#allocation16], 4
      %s2021 = int_to_ptr.vmem [resolvable:$true] %s2020
      %2026 = dma.vmem_to_hbm [thread:$0]  %s2021, 64, %s11, [#allocation15], 16, 16, 1
    $region69: #{step.1} parent=1 // pred_fallthru
      _
    // Predicated region
    $region70: #{step.1} parent=1 // pred_check
      _
    $region71: #{step.1} parent=1 // pred_check_branch
      %2028 = sbr.rel (0) target = $region73
    $region72: #{step.1} parent=1 // pred_region
      %2029 = dma.done [#allocation6], 128
    $region73: #{step.1} parent=1 // pred_fallthru
      _
    // Predicated region
    $region74: #{step.1} parent=1 // pred_check
      _
    $region75: #{step.1} parent=1 // pred_check_branch
      %2031 = sbr.rel (0) target = $region77
    $region76: #{step.1} parent=1 // pred_region
      %2032 = dma.done [#allocation15], 128
    $region77: #{step.1} parent=1 // pred_fallthru
      _
    // Predicated region
    $region78: #{step.1} parent=1 // pred_check
      _
    $region79: #{step.1} parent=1 // pred_check_branch
      %2034 = sbr.rel (0) target = $region81
    $region80: #{step.1} parent=1 // pred_region
      %2035 = dma.done [#allocation15], 64
    $region81: #{step.1} parent=1 // pred_fallthru
      _
    %2036 = vsyncpa [#allocation5], 1
    %2037 = vsyncpa [#allocation8], 1
    %2038 = vsyncpa [#allocation11], 1
    %2039 = vsyncpa [#allocation6], 1
    %2040 = vsyncpa [#allocation15], 1

</llo_original>
